<compile_context>
chip_gen: v7x
topology: tpu7x:2x2x1
jax: 0.10.0
libtpu: 0.0.40
codegen_flags: <defaults>
</compile_context>

<pallas_src>
import functools

import jax
import jax.numpy as jnp
from jax.experimental import pallas as pl
from jax.experimental.pallas import tpu as pltpu


# ----------------------------------------------------------------------------
# In-kernel 3x3 "same" conv on a channel-major, lane-dense activation.
# ----------------------------------------------------------------------------
def _conv3x3(x, w_ref, b_ref, *, H, W):
    """x: (Cin, H*W) f32 value; w_ref: (9, Cout, Cin); b_ref: (Cout, 1).

    Returns the pre-activation conv output as a (Cout, H*W) f32 value.
    """
    rows, S = x.shape
    cout = w_ref.shape[1]

    # Elementary in-bounds conditions for the 8 non-center taps, from one lane
    # iota.  W is a power of two -> column index is a bitwise AND (no int div).
    idx = jax.lax.broadcasted_iota(jnp.int32, (rows, S), 1)
    col = idx & (W - 1)
    row_ok = {-1: idx >= W, 0: None, 1: idx < (H - 1) * W}   # source row exists
    col_ok = {-1: col >= 1, 0: None, 1: col <= W - 2}        # source col exists

    acc = jnp.zeros((cout, S), jnp.float32)
    for kh in range(3):
        di = kh - 1
        for kw in range(3):
            dj = kw - 1
            t = kh * 3 + kw
            d = di * W + dj
            # tap[:, s] = x[:, s + d]; the circular wrap from roll only lands on
            # positions that the mask below zeroes out.
            tap = x if d == 0 else pltpu.roll(x, shift=(-d) % S, axis=1)
            cond = row_ok[di]
            if col_ok[dj] is not None:
                cond = col_ok[dj] if cond is None else jnp.logical_and(cond, col_ok[dj])
            if cond is not None:
                tap = jnp.where(cond, tap, 0.0)
            acc = acc + jnp.dot(w_ref[t], tap, preferred_element_type=jnp.float32)
    return acc + b_ref[...].astype(jnp.float32)


# ----------------------------------------------------------------------------
# Fused kernel: conv1 (3x3 same) -> ReLU -> conv2 (3x3 same).
# Emits h1 (conv1 output, pre-ReLU) and h2 (conv2 output).
# ----------------------------------------------------------------------------
def _fused_backbone_kernel(x_ref, w1_ref, b1_ref, w2_ref, b2_ref,   # inputs
                           h1_ref, h2_ref,                          # outputs
                           *, H, W):
    # x_ref : (1, Cin, H*W)   one image, channel-major, lane-dense
    # w1_ref: (9, C1, Cin)    tap-major conv1 weights
    # w2_ref: (9, C2, C1)     tap-major conv2 weights
    # b*_ref: (C*, 1)
    # h1_ref: (1, C1, H*W)    conv1 output (pre-ReLU)
    # h2_ref: (1, C2, H*W)    conv2 output
    x = x_ref[0].astype(jnp.float32)                      # (Cin, H*W)
    h1 = _conv3x3(x, w1_ref, b1_ref, H=H, W=W)            # (C1, H*W)
    h1_ref[0] = h1.astype(h1_ref.dtype)
    a1 = jnp.maximum(h1, 0.0)                             # relu1, stays in vregs
    h2 = _conv3x3(a1, w2_ref, b2_ref, H=H, W=W)           # (C2, H*W)
    h2_ref[0] = h2.astype(h2_ref.dtype)


def fused_backbone(x_flat, params, H, W):
    """conv1 -> relu -> conv2 in one pallas_call.

    x_flat: (N, Cin, H*W).  Returns (h1, h2): (N, C1, H*W), (N, C2, H*W).
    """
    N, Cin, S = x_flat.shape
    w1, b1 = params["conv1_w"], params["conv1_b"]          # (3,3,Cin,C1), (C1,)
    w2, b2 = params["conv2_w"], params["conv2_b"]          # (3,3,C1,C2), (C2,)
    C1, C2 = w1.shape[-1], w2.shape[-1]

    # Tap-major (t, cout, cin) weights: w_t[kh*3+kw, co, ci] = w[kh, kw, ci, co].
    w1_t = jnp.transpose(w1, (0, 1, 3, 2)).reshape(9, C1, Cin).astype(jnp.float32)
    w2_t = jnp.transpose(w2, (0, 1, 3, 2)).reshape(9, C2, C1).astype(jnp.float32)
    b1_c = b1.reshape(C1, 1).astype(jnp.float32)
    b2_c = b2.reshape(C2, 1).astype(jnp.float32)

    kernel = functools.partial(_fused_backbone_kernel, H=H, W=W)

    return pl.pallas_call(
        kernel,
        out_shape=(
            jax.ShapeDtypeStruct((N, C1, S), x_flat.dtype),
            jax.ShapeDtypeStruct((N, C2, S), x_flat.dtype),
        ),
        grid_spec=pltpu.PrefetchScalarGridSpec(
            num_scalar_prefetch=0,
            grid=(N,),   # one image per step; "parallel" -> both TCs busy on v7x
            in_specs=[
                pl.BlockSpec((1, Cin, S), lambda n: (n, 0, 0)),
                pl.BlockSpec((9, C1, Cin), lambda n: (0, 0, 0)),
                pl.BlockSpec((C1, 1), lambda n: (0, 0)),
                pl.BlockSpec((9, C2, C1), lambda n: (0, 0, 0)),
                pl.BlockSpec((C2, 1), lambda n: (0, 0)),
            ],
            out_specs=(
                pl.BlockSpec((1, C1, S), lambda n: (n, 0, 0)),
                pl.BlockSpec((1, C2, S), lambda n: (n, 0, 0)),
            ),
        ),
        compiler_params=pltpu.CompilerParams(
            dimension_semantics=("parallel",),
            vmem_limit_bytes=32 * 1024 * 1024,
        ),
    )(x_flat, w1_t, b1_c, w2_t, b2_c)


# ----------------------------------------------------------------------------
# FeatureExtractor equivalent.
# ----------------------------------------------------------------------------
def _forward_impl(x_nchw, params, *, layers):
    N, Cin, H, W = x_nchw.shape
    if W & (W - 1):
        # TODO(synk): general (non power-of-two) W needs int div/mod for the tap
        # masks or a precomputed mask input.
        raise NotImplementedError("kernel assumes W is a power of two")

    x_flat = x_nchw.reshape(N, Cin, H * W)          # NCHW is already channel-major: free
    h1_flat, h2_flat = fused_backbone(x_flat, params, H, W)
    h1 = h1_flat.reshape(N, -1, H, W)               # free reshape back to NCHW
    h2 = h2_flat.reshape(N, -1, H, W)

    feats = {}
    for layer in layers:
        if layer == "conv1":
            feats[layer] = h1
        elif layer == "relu1":
            feats[layer] = jnp.maximum(h1, 0.0)
        elif layer == "conv2":
            feats[layer] = h2
        elif layer == "relu2":
            feats[layer] = jnp.maximum(h2, 0.0)
        else:
            raise KeyError(f"unknown layer: {layer}")
    return feats


class FeatureExtractor:
    """Mirrors the PyTorch FeatureExtractor: runs the model, returns hooked outputs."""

    def __init__(self, params, layers):
        self.params = params
        self.layers = tuple(layers)
        self._features = {layer: None for layer in self.layers}
        # jit the whole forward: glue ops fuse, un-requested layers are DCE'd.
        self._forward = jax.jit(functools.partial(_forward_impl, layers=self.layers))

    def forward(self, x_nchw):
        feats = self._forward(x_nchw, self.params)
        self._features = feats
        return feats

    __call__ = forward


# ----------------------------------------------------------------------------
# Pure-JAX reference for correctness check.
# ----------------------------------------------------------------------------
def _ref_conv3x3(x_nchw, w_hwio, b):
    out = jax.lax.conv_general_dilated(
        x_nchw, w_hwio, window_strides=(1, 1), padding="SAME",
        dimension_numbers=("NCHW", "HWIO", "NCHW"))
    return out + b.reshape(1, -1, 1, 1)


def _ref_features(x_nchw, params):
    h1 = _ref_conv3x3(x_nchw, params["conv1_w"], params["conv1_b"])
    a1 = jnp.maximum(h1, 0.0)
    h2 = _ref_conv3x3(a1, params["conv2_w"], params["conv2_b"])
    return {"conv1": h1, "conv2": h2}


if __name__ == "__main__":
    key = jax.random.PRNGKey(0)
    k_x, k_w1, k_b1, k_w2, k_b2 = jax.random.split(key, 5)

    N, Cin, H, W = 2, 4, 16, 16
    C1, C2 = 8, 16

    x = jax.random.normal(k_x, (N, Cin, H, W), dtype=jnp.float32)

    params = {
        "conv1_w": jax.random.normal(k_w1, (3, 3, Cin, C1), jnp.float32) * 0.1,
        "conv1_b": jax.random.normal(k_b1, (C1,), jnp.float32) * 0.1,
        "conv2_w": jax.random.normal(k_w2, (3, 3, C1, C2), jnp.float32) * 0.1,
        "conv2_b": jax.random.normal(k_b2, (C2,), jnp.float32) * 0.1,
    }

    extractor = FeatureExtractor(params, layers=["conv1", "conv2"])
    feats = extractor(x)
    jax.block_until_ready(feats)

    ref = _ref_features(x, params)
    for name in ("conv1", "conv2"):
        assert feats[name].shape == ref[name].shape, name
        err = float(jnp.max(jnp.abs(feats[name] - ref[name])))
        assert err < 1e-4, f"{name}: max abs err {err}"

    print("KERNEL_OK")
</pallas_src>

<mosaic_0001>
module attributes {stable_mosaic.version = 11 : i64} {
  func.func @_fused_backbone_kernel(%arg0: i32, %arg1: memref<1x4x256xf32, #tpu.memory_space<vmem>>, %arg2: memref<9x8x4xf32, #tpu.memory_space<vmem>>, %arg3: memref<8x1xf32, #tpu.memory_space<vmem>>, %arg4: memref<9x16x8xf32, #tpu.memory_space<vmem>>, %arg5: memref<16x1xf32, #tpu.memory_space<vmem>>, %arg6: memref<1x8x256xf32, #tpu.memory_space<vmem>>, %arg7: memref<1x16x256xf32, #tpu.memory_space<vmem>>) attributes {dimension_semantics = [#tpu.dimension_semantics<parallel>], iteration_bounds = array<i64: 2>, scalar_prefetch = 0 : i64, scratch_operands = 0 : i64, tpu.core_type = #tpu.core_type<tc>, window_params = [{transform_indices = @transform_0, window_bounds = array<i64: 1, 4, 256>}, {pipeline_mode = #tpu.pipeline_mode<synchronous>, transform_indices = @transform_1, window_bounds = array<i64: 9, 8, 4>}, {pipeline_mode = #tpu.pipeline_mode<synchronous>, transform_indices = @transform_2, window_bounds = array<i64: 8, 1>}, {pipeline_mode = #tpu.pipeline_mode<synchronous>, transform_indices = @transform_3, window_bounds = array<i64: 9, 16, 8>}, {pipeline_mode = #tpu.pipeline_mode<synchronous>, transform_indices = @transform_4, window_bounds = array<i64: 16, 1>}, {transform_indices = @transform_5, window_bounds = array<i64: 1, 8, 256>}, {transform_indices = @transform_6, window_bounds = array<i64: 1, 16, 256>}]} {
    %c0 = arith.constant 0 : index
    %c0_0 = arith.constant 0 : index
    %c0_1 = arith.constant 0 : index
    %0 = vector.load %arg1[%c0, %c0_0, %c0_1] : memref<1x4x256xf32, #tpu.memory_space<vmem>>, vector<1x4x256xf32>
    %1 = vector.shape_cast %0 : vector<1x4x256xf32> to vector<4x256xf32>
    %2 = tpu.iota {dimensions = array<i32: 1>} : vector<4x256xi32>
    %c15_i32 = arith.constant 15 : i32
    %3 = vector.broadcast %c15_i32 : i32 to vector<4x256xi32>
    %4 = arith.andi %2, %3 : vector<4x256xi32>
    %c16_i32 = arith.constant 16 : i32
    %5 = vector.broadcast %c16_i32 : i32 to vector<4x256xi32>
    %6 = arith.cmpi sge, %2, %5 : vector<4x256xi32>
    %c240_i32 = arith.constant 240 : i32
    %7 = vector.broadcast %c240_i32 : i32 to vector<4x256xi32>
    %8 = arith.cmpi slt, %2, %7 : vector<4x256xi32>
    %c1_i32 = arith.constant 1 : i32
    %9 = vector.broadcast %c1_i32 : i32 to vector<4x256xi32>
    %10 = arith.cmpi sge, %4, %9 : vector<4x256xi32>
    %c14_i32 = arith.constant 14 : i32
    %11 = vector.broadcast %c14_i32 : i32 to vector<4x256xi32>
    %12 = arith.cmpi sle, %4, %11 : vector<4x256xi32>
    %cst = arith.constant 0.000000e+00 : f32
    %13 = vector.broadcast %cst : f32 to vector<8x256xf32>
    %c17_i32 = arith.constant 17 : i32
    %14 = tpu.dynamic_rotate %1 by %c17_i32 dim 1 : vector<4x256xf32>, i32 -> vector<4x256xf32>
    %15 = arith.andi %6, %10 : vector<4x256xi1>
    %cst_2 = arith.constant 0.000000e+00 : f32
    %16 = vector.broadcast %cst_2 : f32 to vector<4x256xf32>
    %17 = arith.select %15, %14, %16 : vector<4x256xi1>, vector<4x256xf32>
    %c0_3 = arith.constant 0 : index
    %c0_4 = arith.constant 0 : index
    %c0_5 = arith.constant 0 : index
    %18 = vector.load %arg2[%c0_3, %c0_4, %c0_5] : memref<9x8x4xf32, #tpu.memory_space<vmem>>, vector<1x8x4xf32>
    %19 = vector.shape_cast %18 : vector<1x8x4xf32> to vector<8x4xf32>
    %cst_6 = arith.constant dense<0.000000e+00> : vector<8x256xf32>
    %20 = tpu.matmul %19, %17, %cst_6 {dimension_numbers = #tpu.dot_dimension_numbers<[1], [0], [0], [1], [0, 0, 1, 1], [], []>} : vector<8x4xf32>, vector<4x256xf32>, vector<8x256xf32> -> vector<8x256xf32>
    %21 = arith.addf %13, %20 : vector<8x256xf32>
    %c16_i32_7 = arith.constant 16 : i32
    %22 = tpu.dynamic_rotate %1 by %c16_i32_7 dim 1 : vector<4x256xf32>, i32 -> vector<4x256xf32>
    %cst_8 = arith.constant 0.000000e+00 : f32
    %23 = vector.broadcast %cst_8 : f32 to vector<4x256xf32>
    %24 = arith.select %6, %22, %23 : vector<4x256xi1>, vector<4x256xf32>
    %c1 = arith.constant 1 : index
    %c0_9 = arith.constant 0 : index
    %c0_10 = arith.constant 0 : index
    %25 = vector.load %arg2[%c1, %c0_9, %c0_10] : memref<9x8x4xf32, #tpu.memory_space<vmem>>, vector<1x8x4xf32>
    %26 = vector.shape_cast %25 : vector<1x8x4xf32> to vector<8x4xf32>
    %cst_11 = arith.constant dense<0.000000e+00> : vector<8x256xf32>
    %27 = tpu.matmul %26, %24, %cst_11 {dimension_numbers = #tpu.dot_dimension_numbers<[1], [0], [0], [1], [0, 0, 1, 1], [], []>} : vector<8x4xf32>, vector<4x256xf32>, vector<8x256xf32> -> vector<8x256xf32>
    %28 = arith.addf %21, %27 : vector<8x256xf32>
    %c15_i32_12 = arith.constant 15 : i32
    %29 = tpu.dynamic_rotate %1 by %c15_i32_12 dim 1 : vector<4x256xf32>, i32 -> vector<4x256xf32>
    %30 = arith.andi %6, %12 : vector<4x256xi1>
    %cst_13 = arith.constant 0.000000e+00 : f32
    %31 = vector.broadcast %cst_13 : f32 to vector<4x256xf32>
    %32 = arith.select %30, %29, %31 : vector<4x256xi1>, vector<4x256xf32>
    %c2 = arith.constant 2 : index
    %c0_14 = arith.constant 0 : index
    %c0_15 = arith.constant 0 : index
    %33 = vector.load %arg2[%c2, %c0_14, %c0_15] : memref<9x8x4xf32, #tpu.memory_space<vmem>>, vector<1x8x4xf32>
    %34 = vector.shape_cast %33 : vector<1x8x4xf32> to vector<8x4xf32>
    %cst_16 = arith.constant dense<0.000000e+00> : vector<8x256xf32>
    %35 = tpu.matmul %34, %32, %cst_16 {dimension_numbers = #tpu.dot_dimension_numbers<[1], [0], [0], [1], [0, 0, 1, 1], [], []>} : vector<8x4xf32>, vector<4x256xf32>, vector<8x256xf32> -> vector<8x256xf32>
    %36 = arith.addf %28, %35 : vector<8x256xf32>
    %c1_i32_17 = arith.constant 1 : i32
    %37 = tpu.dynamic_rotate %1 by %c1_i32_17 dim 1 : vector<4x256xf32>, i32 -> vector<4x256xf32>
    %cst_18 = arith.constant 0.000000e+00 : f32
    %38 = vector.broadcast %cst_18 : f32 to vector<4x256xf32>
    %39 = arith.select %10, %37, %38 : vector<4x256xi1>, vector<4x256xf32>
    %c3 = arith.constant 3 : index
    %c0_19 = arith.constant 0 : index
    %c0_20 = arith.constant 0 : index
    %40 = vector.load %arg2[%c3, %c0_19, %c0_20] : memref<9x8x4xf32, #tpu.memory_space<vmem>>, vector<1x8x4xf32>
    %41 = vector.shape_cast %40 : vector<1x8x4xf32> to vector<8x4xf32>
    %cst_21 = arith.constant dense<0.000000e+00> : vector<8x256xf32>
    %42 = tpu.matmul %41, %39, %cst_21 {dimension_numbers = #tpu.dot_dimension_numbers<[1], [0], [0], [1], [0, 0, 1, 1], [], []>} : vector<8x4xf32>, vector<4x256xf32>, vector<8x256xf32> -> vector<8x256xf32>
    %43 = arith.addf %36, %42 : vector<8x256xf32>
    %c4 = arith.constant 4 : index
    %c0_22 = arith.constant 0 : index
    %c0_23 = arith.constant 0 : index
    %44 = vector.load %arg2[%c4, %c0_22, %c0_23] : memref<9x8x4xf32, #tpu.memory_space<vmem>>, vector<1x8x4xf32>
    %45 = vector.shape_cast %44 : vector<1x8x4xf32> to vector<8x4xf32>
    %cst_24 = arith.constant dense<0.000000e+00> : vector<8x256xf32>
    %46 = tpu.matmul %45, %1, %cst_24 {dimension_numbers = #tpu.dot_dimension_numbers<[1], [0], [0], [1], [0, 0, 1, 1], [], []>} : vector<8x4xf32>, vector<4x256xf32>, vector<8x256xf32> -> vector<8x256xf32>
    %47 = arith.addf %43, %46 : vector<8x256xf32>
    %c255_i32 = arith.constant 255 : i32
    %48 = tpu.dynamic_rotate %1 by %c255_i32 dim 1 : vector<4x256xf32>, i32 -> vector<4x256xf32>
    %cst_25 = arith.constant 0.000000e+00 : f32
    %49 = vector.broadcast %cst_25 : f32 to vector<4x256xf32>
    %50 = arith.select %12, %48, %49 : vector<4x256xi1>, vector<4x256xf32>
    %c5 = arith.constant 5 : index
    %c0_26 = arith.constant 0 : index
    %c0_27 = arith.constant 0 : index
    %51 = vector.load %arg2[%c5, %c0_26, %c0_27] : memref<9x8x4xf32, #tpu.memory_space<vmem>>, vector<1x8x4xf32>
    %52 = vector.shape_cast %51 : vector<1x8x4xf32> to vector<8x4xf32>
    %cst_28 = arith.constant dense<0.000000e+00> : vector<8x256xf32>
    %53 = tpu.matmul %52, %50, %cst_28 {dimension_numbers = #tpu.dot_dimension_numbers<[1], [0], [0], [1], [0, 0, 1, 1], [], []>} : vector<8x4xf32>, vector<4x256xf32>, vector<8x256xf32> -> vector<8x256xf32>
    %54 = arith.addf %47, %53 : vector<8x256xf32>
    %c241_i32 = arith.constant 241 : i32
    %55 = tpu.dynamic_rotate %1 by %c241_i32 dim 1 : vector<4x256xf32>, i32 -> vector<4x256xf32>
    %56 = arith.andi %8, %10 : vector<4x256xi1>
    %cst_29 = arith.constant 0.000000e+00 : f32
    %57 = vector.broadcast %cst_29 : f32 to vector<4x256xf32>
    %58 = arith.select %56, %55, %57 : vector<4x256xi1>, vector<4x256xf32>
    %c6 = arith.constant 6 : index
    %c0_30 = arith.constant 0 : index
    %c0_31 = arith.constant 0 : index
    %59 = vector.load %arg2[%c6, %c0_30, %c0_31] : memref<9x8x4xf32, #tpu.memory_space<vmem>>, vector<1x8x4xf32>
    %60 = vector.shape_cast %59 : vector<1x8x4xf32> to vector<8x4xf32>
    %cst_32 = arith.constant dense<0.000000e+00> : vector<8x256xf32>
    %61 = tpu.matmul %60, %58, %cst_32 {dimension_numbers = #tpu.dot_dimension_numbers<[1], [0], [0], [1], [0, 0, 1, 1], [], []>} : vector<8x4xf32>, vector<4x256xf32>, vector<8x256xf32> -> vector<8x256xf32>
    %62 = arith.addf %54, %61 : vector<8x256xf32>
    %c240_i32_33 = arith.constant 240 : i32
    %63 = tpu.dynamic_rotate %1 by %c240_i32_33 dim 1 : vector<4x256xf32>, i32 -> vector<4x256xf32>
    %cst_34 = arith.constant 0.000000e+00 : f32
    %64 = vector.broadcast %cst_34 : f32 to vector<4x256xf32>
    %65 = arith.select %8, %63, %64 : vector<4x256xi1>, vector<4x256xf32>
    %c7 = arith.constant 7 : index
    %c0_35 = arith.constant 0 : index
    %c0_36 = arith.constant 0 : index
    %66 = vector.load %arg2[%c7, %c0_35, %c0_36] : memref<9x8x4xf32, #tpu.memory_space<vmem>>, vector<1x8x4xf32>
    %67 = vector.shape_cast %66 : vector<1x8x4xf32> to vector<8x4xf32>
    %cst_37 = arith.constant dense<0.000000e+00> : vector<8x256xf32>
    %68 = tpu.matmul %67, %65, %cst_37 {dimension_numbers = #tpu.dot_dimension_numbers<[1], [0], [0], [1], [0, 0, 1, 1], [], []>} : vector<8x4xf32>, vector<4x256xf32>, vector<8x256xf32> -> vector<8x256xf32>
    %69 = arith.addf %62, %68 : vector<8x256xf32>
    %c239_i32 = arith.constant 239 : i32
    %70 = tpu.dynamic_rotate %1 by %c239_i32 dim 1 : vector<4x256xf32>, i32 -> vector<4x256xf32>
    %71 = arith.andi %8, %12 : vector<4x256xi1>
    %cst_38 = arith.constant 0.000000e+00 : f32
    %72 = vector.broadcast %cst_38 : f32 to vector<4x256xf32>
    %73 = arith.select %71, %70, %72 : vector<4x256xi1>, vector<4x256xf32>
    %c8 = arith.constant 8 : index
    %c0_39 = arith.constant 0 : index
    %c0_40 = arith.constant 0 : index
    %74 = vector.load %arg2[%c8, %c0_39, %c0_40] : memref<9x8x4xf32, #tpu.memory_space<vmem>>, vector<1x8x4xf32>
    %75 = vector.shape_cast %74 : vector<1x8x4xf32> to vector<8x4xf32>
    %cst_41 = arith.constant dense<0.000000e+00> : vector<8x256xf32>
    %76 = tpu.matmul %75, %73, %cst_41 {dimension_numbers = #tpu.dot_dimension_numbers<[1], [0], [0], [1], [0, 0, 1, 1], [], []>} : vector<8x4xf32>, vector<4x256xf32>, vector<8x256xf32> -> vector<8x256xf32>
    %77 = arith.addf %69, %76 : vector<8x256xf32>
    %c0_42 = arith.constant 0 : index
    %c0_43 = arith.constant 0 : index
    %78 = vector.load %arg3[%c0_42, %c0_43] : memref<8x1xf32, #tpu.memory_space<vmem>>, vector<8x1xf32>
    %79 = vector.broadcast %78 : vector<8x1xf32> to vector<8x256xf32>
    %80 = arith.addf %77, %79 : vector<8x256xf32>
    %c0_44 = arith.constant 0 : index
    %c0_45 = arith.constant 0 : index
    %c0_46 = arith.constant 0 : index
    %81 = vector.load %arg6[%c0_44, %c0_45, %c0_46] : memref<1x8x256xf32, #tpu.memory_space<vmem>>, vector<1x8x256xf32>
    %82 = vector.shape_cast %81 : vector<1x8x256xf32> to vector<8x256xf32>
    %83 = vector.shape_cast %80 : vector<8x256xf32> to vector<1x8x256xf32>
    tpu.vector_store %arg6[%c0_44, %c0_45, %c0_46], %83 {strides = array<i32>} : memref<1x8x256xf32, #tpu.memory_space<vmem>>, vector<1x8x256xf32>,
    %cst_47 = arith.constant 0.000000e+00 : f32
    %84 = vector.broadcast %cst_47 : f32 to vector<8x256xf32>
    %85 = arith.maximumf %80, %84 : vector<8x256xf32>
    %86 = tpu.iota {dimensions = array<i32: 1>} : vector<8x256xi32>
    %c15_i32_48 = arith.constant 15 : i32
    %87 = vector.broadcast %c15_i32_48 : i32 to vector<8x256xi32>
    %88 = arith.andi %86, %87 : vector<8x256xi32>
    %c16_i32_49 = arith.constant 16 : i32
    %89 = vector.broadcast %c16_i32_49 : i32 to vector<8x256xi32>
    %90 = arith.cmpi sge, %86, %89 : vector<8x256xi32>
    %c240_i32_50 = arith.constant 240 : i32
    %91 = vector.broadcast %c240_i32_50 : i32 to vector<8x256xi32>
    %92 = arith.cmpi slt, %86, %91 : vector<8x256xi32>
    %c1_i32_51 = arith.constant 1 : i32
    %93 = vector.broadcast %c1_i32_51 : i32 to vector<8x256xi32>
    %94 = arith.cmpi sge, %88, %93 : vector<8x256xi32>
    %c14_i32_52 = arith.constant 14 : i32
    %95 = vector.broadcast %c14_i32_52 : i32 to vector<8x256xi32>
    %96 = arith.cmpi sle, %88, %95 : vector<8x256xi32>
    %cst_53 = arith.constant 0.000000e+00 : f32
    %97 = vector.broadcast %cst_53 : f32 to vector<16x256xf32>
    %c17_i32_54 = arith.constant 17 : i32
    %98 = tpu.dynamic_rotate %85 by %c17_i32_54 dim 1 : vector<8x256xf32>, i32 -> vector<8x256xf32>
    %99 = arith.andi %90, %94 : vector<8x256xi1>
    %cst_55 = arith.constant 0.000000e+00 : f32
    %100 = vector.broadcast %cst_55 : f32 to vector<8x256xf32>
    %101 = arith.select %99, %98, %100 : vector<8x256xi1>, vector<8x256xf32>
    %c0_56 = arith.constant 0 : index
    %c0_57 = arith.constant 0 : index
    %c0_58 = arith.constant 0 : index
    %102 = vector.load %arg4[%c0_56, %c0_57, %c0_58] : memref<9x16x8xf32, #tpu.memory_space<vmem>>, vector<1x16x8xf32>
    %103 = vector.shape_cast %102 : vector<1x16x8xf32> to vector<16x8xf32>
    %cst_59 = arith.constant dense<0.000000e+00> : vector<16x256xf32>
    %104 = tpu.matmul %103, %101, %cst_59 {dimension_numbers = #tpu.dot_dimension_numbers<[1], [0], [0], [1], [0, 0, 1, 1], [], []>} : vector<16x8xf32>, vector<8x256xf32>, vector<16x256xf32> -> vector<16x256xf32>
    %105 = arith.addf %97, %104 : vector<16x256xf32>
    %c16_i32_60 = arith.constant 16 : i32
    %106 = tpu.dynamic_rotate %85 by %c16_i32_60 dim 1 : vector<8x256xf32>, i32 -> vector<8x256xf32>
    %cst_61 = arith.constant 0.000000e+00 : f32
    %107 = vector.broadcast %cst_61 : f32 to vector<8x256xf32>
    %108 = arith.select %90, %106, %107 : vector<8x256xi1>, vector<8x256xf32>
    %c1_62 = arith.constant 1 : index
    %c0_63 = arith.constant 0 : index
    %c0_64 = arith.constant 0 : index
    %109 = vector.load %arg4[%c1_62, %c0_63, %c0_64] : memref<9x16x8xf32, #tpu.memory_space<vmem>>, vector<1x16x8xf32>
    %110 = vector.shape_cast %109 : vector<1x16x8xf32> to vector<16x8xf32>
    %cst_65 = arith.constant dense<0.000000e+00> : vector<16x256xf32>
    %111 = tpu.matmul %110, %108, %cst_65 {dimension_numbers = #tpu.dot_dimension_numbers<[1], [0], [0], [1], [0, 0, 1, 1], [], []>} : vector<16x8xf32>, vector<8x256xf32>, vector<16x256xf32> -> vector<16x256xf32>
    %112 = arith.addf %105, %111 : vector<16x256xf32>
    %c15_i32_66 = arith.constant 15 : i32
    %113 = tpu.dynamic_rotate %85 by %c15_i32_66 dim 1 : vector<8x256xf32>, i32 -> vector<8x256xf32>
    %114 = arith.andi %90, %96 : vector<8x256xi1>
    %cst_67 = arith.constant 0.000000e+00 : f32
    %115 = vector.broadcast %cst_67 : f32 to vector<8x256xf32>
    %116 = arith.select %114, %113, %115 : vector<8x256xi1>, vector<8x256xf32>
    %c2_68 = arith.constant 2 : index
    %c0_69 = arith.constant 0 : index
    %c0_70 = arith.constant 0 : index
    %117 = vector.load %arg4[%c2_68, %c0_69, %c0_70] : memref<9x16x8xf32, #tpu.memory_space<vmem>>, vector<1x16x8xf32>
    %118 = vector.shape_cast %117 : vector<1x16x8xf32> to vector<16x8xf32>
    %cst_71 = arith.constant dense<0.000000e+00> : vector<16x256xf32>
    %119 = tpu.matmul %118, %116, %cst_71 {dimension_numbers = #tpu.dot_dimension_numbers<[1], [0], [0], [1], [0, 0, 1, 1], [], []>} : vector<16x8xf32>, vector<8x256xf32>, vector<16x256xf32> -> vector<16x256xf32>
    %120 = arith.addf %112, %119 : vector<16x256xf32>
    %c1_i32_72 = arith.constant 1 : i32
    %121 = tpu.dynamic_rotate %85 by %c1_i32_72 dim 1 : vector<8x256xf32>, i32 -> vector<8x256xf32>
    %cst_73 = arith.constant 0.000000e+00 : f32
    %122 = vector.broadcast %cst_73 : f32 to vector<8x256xf32>
    %123 = arith.select %94, %121, %122 : vector<8x256xi1>, vector<8x256xf32>
    %c3_74 = arith.constant 3 : index
    %c0_75 = arith.constant 0 : index
    %c0_76 = arith.constant 0 : index
    %124 = vector.load %arg4[%c3_74, %c0_75, %c0_76] : memref<9x16x8xf32, #tpu.memory_space<vmem>>, vector<1x16x8xf32>
    %125 = vector.shape_cast %124 : vector<1x16x8xf32> to vector<16x8xf32>
    %cst_77 = arith.constant dense<0.000000e+00> : vector<16x256xf32>
    %126 = tpu.matmul %125, %123, %cst_77 {dimension_numbers = #tpu.dot_dimension_numbers<[1], [0], [0], [1], [0, 0, 1, 1], [], []>} : vector<16x8xf32>, vector<8x256xf32>, vector<16x256xf32> -> vector<16x256xf32>
    %127 = arith.addf %120, %126 : vector<16x256xf32>
    %c4_78 = arith.constant 4 : index
    %c0_79 = arith.constant 0 : index
    %c0_80 = arith.constant 0 : index
    %128 = vector.load %arg4[%c4_78, %c0_79, %c0_80] : memref<9x16x8xf32, #tpu.memory_space<vmem>>, vector<1x16x8xf32>
    %129 = vector.shape_cast %128 : vector<1x16x8xf32> to vector<16x8xf32>
    %cst_81 = arith.constant dense<0.000000e+00> : vector<16x256xf32>
    %130 = tpu.matmul %129, %85, %cst_81 {dimension_numbers = #tpu.dot_dimension_numbers<[1], [0], [0], [1], [0, 0, 1, 1], [], []>} : vector<16x8xf32>, vector<8x256xf32>, vector<16x256xf32> -> vector<16x256xf32>
    %131 = arith.addf %127, %130 : vector<16x256xf32>
    %c255_i32_82 = arith.constant 255 : i32
    %132 = tpu.dynamic_rotate %85 by %c255_i32_82 dim 1 : vector<8x256xf32>, i32 -> vector<8x256xf32>
    %cst_83 = arith.constant 0.000000e+00 : f32
    %133 = vector.broadcast %cst_83 : f32 to vector<8x256xf32>
    %134 = arith.select %96, %132, %133 : vector<8x256xi1>, vector<8x256xf32>
    %c5_84 = arith.constant 5 : index
    %c0_85 = arith.constant 0 : index
    %c0_86 = arith.constant 0 : index
    %135 = vector.load %arg4[%c5_84, %c0_85, %c0_86] : memref<9x16x8xf32, #tpu.memory_space<vmem>>, vector<1x16x8xf32>
    %136 = vector.shape_cast %135 : vector<1x16x8xf32> to vector<16x8xf32>
    %cst_87 = arith.constant dense<0.000000e+00> : vector<16x256xf32>
    %137 = tpu.matmul %136, %134, %cst_87 {dimension_numbers = #tpu.dot_dimension_numbers<[1], [0], [0], [1], [0, 0, 1, 1], [], []>} : vector<16x8xf32>, vector<8x256xf32>, vector<16x256xf32> -> vector<16x256xf32>
    %138 = arith.addf %131, %137 : vector<16x256xf32>
    %c241_i32_88 = arith.constant 241 : i32
    %139 = tpu.dynamic_rotate %85 by %c241_i32_88 dim 1 : vector<8x256xf32>, i32 -> vector<8x256xf32>
    %140 = arith.andi %92, %94 : vector<8x256xi1>
    %cst_89 = arith.constant 0.000000e+00 : f32
    %141 = vector.broadcast %cst_89 : f32 to vector<8x256xf32>
    %142 = arith.select %140, %139, %141 : vector<8x256xi1>, vector<8x256xf32>
    %c6_90 = arith.constant 6 : index
    %c0_91 = arith.constant 0 : index
    %c0_92 = arith.constant 0 : index
    %143 = vector.load %arg4[%c6_90, %c0_91, %c0_92] : memref<9x16x8xf32, #tpu.memory_space<vmem>>, vector<1x16x8xf32>
    %144 = vector.shape_cast %143 : vector<1x16x8xf32> to vector<16x8xf32>
    %cst_93 = arith.constant dense<0.000000e+00> : vector<16x256xf32>
    %145 = tpu.matmul %144, %142, %cst_93 {dimension_numbers = #tpu.dot_dimension_numbers<[1], [0], [0], [1], [0, 0, 1, 1], [], []>} : vector<16x8xf32>, vector<8x256xf32>, vector<16x256xf32> -> vector<16x256xf32>
    %146 = arith.addf %138, %145 : vector<16x256xf32>
    %c240_i32_94 = arith.constant 240 : i32
    %147 = tpu.dynamic_rotate %85 by %c240_i32_94 dim 1 : vector<8x256xf32>, i32 -> vector<8x256xf32>
    %cst_95 = arith.constant 0.000000e+00 : f32
    %148 = vector.broadcast %cst_95 : f32 to vector<8x256xf32>
    %149 = arith.select %92, %147, %148 : vector<8x256xi1>, vector<8x256xf32>
    %c7_96 = arith.constant 7 : index
    %c0_97 = arith.constant 0 : index
    %c0_98 = arith.constant 0 : index
    %150 = vector.load %arg4[%c7_96, %c0_97, %c0_98] : memref<9x16x8xf32, #tpu.memory_space<vmem>>, vector<1x16x8xf32>
    %151 = vector.shape_cast %150 : vector<1x16x8xf32> to vector<16x8xf32>
    %cst_99 = arith.constant dense<0.000000e+00> : vector<16x256xf32>
    %152 = tpu.matmul %151, %149, %cst_99 {dimension_numbers = #tpu.dot_dimension_numbers<[1], [0], [0], [1], [0, 0, 1, 1], [], []>} : vector<16x8xf32>, vector<8x256xf32>, vector<16x256xf32> -> vector<16x256xf32>
    %153 = arith.addf %146, %152 : vector<16x256xf32>
    %c239_i32_100 = arith.constant 239 : i32
    %154 = tpu.dynamic_rotate %85 by %c239_i32_100 dim 1 : vector<8x256xf32>, i32 -> vector<8x256xf32>
    %155 = arith.andi %92, %96 : vector<8x256xi1>
    %cst_101 = arith.constant 0.000000e+00 : f32
    %156 = vector.broadcast %cst_101 : f32 to vector<8x256xf32>
    %157 = arith.select %155, %154, %156 : vector<8x256xi1>, vector<8x256xf32>
    %c8_102 = arith.constant 8 : index
    %c0_103 = arith.constant 0 : index
    %c0_104 = arith.constant 0 : index
    %158 = vector.load %arg4[%c8_102, %c0_103, %c0_104] : memref<9x16x8xf32, #tpu.memory_space<vmem>>, vector<1x16x8xf32>
    %159 = vector.shape_cast %158 : vector<1x16x8xf32> to vector<16x8xf32>
    %cst_105 = arith.constant dense<0.000000e+00> : vector<16x256xf32>
    %160 = tpu.matmul %159, %157, %cst_105 {dimension_numbers = #tpu.dot_dimension_numbers<[1], [0], [0], [1], [0, 0, 1, 1], [], []>} : vector<16x8xf32>, vector<8x256xf32>, vector<16x256xf32> -> vector<16x256xf32>
    %161 = arith.addf %153, %160 : vector<16x256xf32>
    %c0_106 = arith.constant 0 : index
    %c0_107 = arith.constant 0 : index
    %162 = vector.load %arg5[%c0_106, %c0_107] : memref<16x1xf32, #tpu.memory_space<vmem>>, vector<16x1xf32>
    %163 = vector.broadcast %162 : vector<16x1xf32> to vector<16x256xf32>
    %164 = arith.addf %161, %163 : vector<16x256xf32>
    %c0_108 = arith.constant 0 : index
    %c0_109 = arith.constant 0 : index
    %c0_110 = arith.constant 0 : index
    %165 = vector.load %arg7[%c0_108, %c0_109, %c0_110] : memref<1x16x256xf32, #tpu.memory_space<vmem>>, vector<1x16x256xf32>
    %166 = vector.shape_cast %165 : vector<1x16x256xf32> to vector<16x256xf32>
    %167 = vector.shape_cast %164 : vector<16x256xf32> to vector<1x16x256xf32>
    tpu.vector_store %arg7[%c0_108, %c0_109, %c0_110], %167 {strides = array<i32>} : memref<1x16x256xf32, #tpu.memory_space<vmem>>, vector<1x16x256xf32>,
    return
  }
  func.func @transform_0(%arg0: i32) -> (i32, i32, i32) {
    %c0_i32 = arith.constant 0 : i32
    %c0_i32_0 = arith.constant 0 : i32
    %c0_i32_1 = arith.constant 0 : i32
    return %arg0, %c0_i32, %c0_i32_0 : i32, i32, i32
  }
  func.func @transform_1(%arg0: i32) -> (i32, i32, i32) {
    %c0_i32 = arith.constant 0 : i32
    %c0_i32_0 = arith.constant 0 : i32
    %c0_i32_1 = arith.constant 0 : i32
    %c0_i32_2 = arith.constant 0 : i32
    return %c0_i32, %c0_i32_0, %c0_i32_1 : i32, i32, i32
  }
  func.func @transform_2(%arg0: i32) -> (i32, i32) {
    %c0_i32 = arith.constant 0 : i32
    %c0_i32_0 = arith.constant 0 : i32
    %c0_i32_1 = arith.constant 0 : i32
    return %c0_i32, %c0_i32_0 : i32, i32
  }
  func.func @transform_3(%arg0: i32) -> (i32, i32, i32) {
    %c0_i32 = arith.constant 0 : i32
    %c0_i32_0 = arith.constant 0 : i32
    %c0_i32_1 = arith.constant 0 : i32
    %c0_i32_2 = arith.constant 0 : i32
    return %c0_i32, %c0_i32_0, %c0_i32_1 : i32, i32, i32
  }
  func.func @transform_4(%arg0: i32) -> (i32, i32) {
    %c0_i32 = arith.constant 0 : i32
    %c0_i32_0 = arith.constant 0 : i32
    %c0_i32_1 = arith.constant 0 : i32
    return %c0_i32, %c0_i32_0 : i32, i32
  }
  func.func @transform_5(%arg0: i32) -> (i32, i32, i32) {
    %c0_i32 = arith.constant 0 : i32
    %c0_i32_0 = arith.constant 0 : i32
    %c0_i32_1 = arith.constant 0 : i32
    return %arg0, %c0_i32, %c0_i32_0 : i32, i32, i32
  }
  func.func @transform_6(%arg0: i32) -> (i32, i32, i32) {
    %c0_i32 = arith.constant 0 : i32
    %c0_i32_0 = arith.constant 0 : i32
    %c0_i32_1 = arith.constant 0 : i32
    return %arg0, %c0_i32, %c0_i32_0 : i32, i32, i32
  }
}

</mosaic_0001>

<llo_original>
// kernel: _forward_impl.1
$region0: #{_forward_impl.1}
  #allocation0 [shape = 'u32[]', space=smem, size = 0x4, offset = 0x4, fixed_abs, tag = 'smem constant byte address 0x4 - core index']
  #allocation1 [shape = 'u32[144,128]{1,0:T(1,128)}', space=vmem, size = 0x12000, scoped, tag = 'internal scratch']
  %s0 = inlined_call_operand.vmem [shape: f32[2,4,256], index: 0, kind: input, shape index: {}]
  %s1 = inlined_call_operand.vmem [shape: f32[9,8,4], index: 1, kind: input, shape index: {}]
  %s2 = inlined_call_operand.vmem [shape: f32[8,1], index: 2, kind: input, shape index: {}]
  %s3 = inlined_call_operand.vmem [shape: f32[9,16,8], index: 3, kind: input, shape index: {}]
  %s4 = inlined_call_operand.vmem [shape: f32[16,1], index: 4, kind: input, shape index: {}]
  %s5 = inlined_call_operand.vmem [shape: f32[2,8,256], index: 5, kind: output, shape index: {0}]
  %s6 = inlined_call_operand.vmem [shape: f32[2,16,256], index: 6, kind: output, shape index: {1}]
  %7 = xla_tuple %s5, %s6
  %s8 = sld [smem:[#allocation0]]
  $region61: #{_forward_impl.1} parent=0
    _
  %s10 = ssub.s32 1, %s8
  %s11 = scalar_select 0, %s10, %s8
  loop: start=0, step=1, limit=4
  $region2: #{_forward_impl.1} parent=0 // loop_pre_header
    _
  $region3: #{_forward_impl.1} parent=0 // loop_header
    %s13 = sphi 0, %s17
    %p14 = scmp.ge.s32.totalorder %s13, 4
    %s23 = sphi 0, %s25
    %s26 = sphi 0, %s23
    %s27 = sphi 0, %s26
    %s43 = sphi 0, %s27
    %s47 = sphi 0, %s47
    %s49 = sphi 0, %s47
    %s50 = sphi 0, %s49
    %s64 = sphi 0, %s50
    %s68 = sphi 0, %s68
    %s70 = sphi 0, %s68
    %s71 = sphi 0, %s70
    %s85 = sphi 0, %s71
    %s89 = sphi 0, %s89
    %s91 = sphi 0, %s89
    %s92 = sphi 0, %s91
    %s106 = sphi 0, %s92
    %s110 = sphi 0, %s110
    %s112 = sphi 0, %s110
    %s113 = sphi 0, %s112
    %s127 = sphi 0, %s113
    %s133 = sphi 0, %s135
    %s136 = sphi 0, %s133
    %s137 = sphi 0, %s136
    %s153 = sphi 0, %s137
    %s159 = sphi 0, %s161
    %s162 = sphi 0, %s159
    %s163 = sphi 0, %s162
    %s179 = sphi 0, %s163
  $region4: #{_forward_impl.1} parent=0 // loop_header_branch
    %16 = sbr.rel (%p14) target = $region8
  $region5: #{_forward_impl.1} parent=0 // loop_body
    %s18 = ssub.s32 %s13, 1
    %s19 = ssub.s32 %s13, 2
    %s20 = sadd.s32 %s13, 1
    %s21 = ssub.s32 %s13, %s20
    %p22 = scmp.eq.s32.totalorder %s21, 0
    %s24 = sadd.s32 %s23, 1
    %s25 = scalar_select %p22, %s23, %s24
    %p28 = pneg %p22
    %p29 = scmp.eq.s32.totalorder %s13, 1
    %p30 = por %p28, %p29
    %p31 = scmp.ne.s32.totalorder %s23, %s26
    %p32 = scmp.eq.s32.totalorder %s13, 0
    %p33 = por %p31, %p32
    %p34 = scmp.ne.s32.totalorder %s23, %s26
    %p35 = scmp.eq.s32.totalorder %s18, 1
    %p36 = por %p34, %p35
    %p37 = scmp.ne.s32.totalorder %s26, %s27
    %p38 = scmp.eq.s32.totalorder %s18, 0
    %p39 = por %p37, %p38
    %p40 = scmp.ne.s32.totalorder %s26, %s27
    %p41 = scmp.eq.s32.totalorder %s19, 1
    %p42 = por %p40, %p41
    %p44 = scmp.ne.s32.totalorder %s27, %s43
    %p45 = scmp.eq.s32.totalorder %s19, 0
    %p46 = por %p44, %p45
    %s48 = sadd.s32 %s47, 1
    %p51 = scmp.eq.s32.totalorder %s13, 1
    %p52 = scmp.ne.s32.totalorder %s47, %s49
    %p53 = scmp.eq.s32.totalorder %s13, 0
    %p54 = por %p52, %p53
    %p55 = scmp.ne.s32.totalorder %s47, %s49
    %p56 = scmp.eq.s32.totalorder %s18, 1
    %p57 = por %p55, %p56
    %p58 = scmp.ne.s32.totalorder %s49, %s50
    %p59 = scmp.eq.s32.totalorder %s18, 0
    %p60 = por %p58, %p59
    %p61 = scmp.ne.s32.totalorder %s49, %s50
    %p62 = scmp.eq.s32.totalorder %s19, 1
    %p63 = por %p61, %p62
    %p65 = scmp.ne.s32.totalorder %s50, %s64
    %p66 = scmp.eq.s32.totalorder %s19, 0
    %p67 = por %p65, %p66
    %s69 = sadd.s32 %s68, 1
    %p72 = scmp.eq.s32.totalorder %s13, 1
    %p73 = scmp.ne.s32.totalorder %s68, %s70
    %p74 = scmp.eq.s32.totalorder %s13, 0
    %p75 = por %p73, %p74
    %p76 = scmp.ne.s32.totalorder %s68, %s70
    %p77 = scmp.eq.s32.totalorder %s18, 1
    %p78 = por %p76, %p77
    %p79 = scmp.ne.s32.totalorder %s70, %s71
    %p80 = scmp.eq.s32.totalorder %s18, 0
    %p81 = por %p79, %p80
    %p82 = scmp.ne.s32.totalorder %s70, %s71
    %p83 = scmp.eq.s32.totalorder %s19, 1
    %p84 = por %p82, %p83
    %p86 = scmp.ne.s32.totalorder %s71, %s85
    %p87 = scmp.eq.s32.totalorder %s19, 0
    %p88 = por %p86, %p87
    %s90 = sadd.s32 %s89, 1
    %p93 = scmp.eq.s32.totalorder %s13, 1
    %p94 = scmp.ne.s32.totalorder %s89, %s91
    %p95 = scmp.eq.s32.totalorder %s13, 0
    %p96 = por %p94, %p95
    %p97 = scmp.ne.s32.totalorder %s89, %s91
    %p98 = scmp.eq.s32.totalorder %s18, 1
    %p99 = por %p97, %p98
    %p100 = scmp.ne.s32.totalorder %s91, %s92
    %p101 = scmp.eq.s32.totalorder %s18, 0
    %p102 = por %p100, %p101
    %p103 = scmp.ne.s32.totalorder %s91, %s92
    %p104 = scmp.eq.s32.totalorder %s19, 1
    %p105 = por %p103, %p104
    %p107 = scmp.ne.s32.totalorder %s92, %s106
    %p108 = scmp.eq.s32.totalorder %s19, 0
    %p109 = por %p107, %p108
    %s111 = sadd.s32 %s110, 1
    %p114 = scmp.eq.s32.totalorder %s13, 1
    %p115 = scmp.ne.s32.totalorder %s110, %s112
    %p116 = scmp.eq.s32.totalorder %s13, 0
    %p117 = por %p115, %p116
    %p118 = scmp.ne.s32.totalorder %s110, %s112
    %p119 = scmp.eq.s32.totalorder %s18, 1
    %p120 = por %p118, %p119
    %p121 = scmp.ne.s32.totalorder %s112, %s113
    %p122 = scmp.eq.s32.totalorder %s18, 0
    %p123 = por %p121, %p122
    %p124 = scmp.ne.s32.totalorder %s112, %s113
    %p125 = scmp.eq.s32.totalorder %s19, 1
    %p126 = por %p124, %p125
    %p128 = scmp.ne.s32.totalorder %s113, %s127
    %p129 = scmp.eq.s32.totalorder %s19, 0
    %p130 = por %p128, %p129
    %s131 = ssub.s32 %s13, %s20
    %p132 = scmp.eq.s32.totalorder %s131, 0
    %s134 = sadd.s32 %s133, 1
    %s135 = scalar_select %p132, %s133, %s134
    %p138 = pneg %p132
    %p139 = scmp.eq.s32.totalorder %s13, 1
    %p140 = por %p138, %p139
    %p141 = scmp.ne.s32.totalorder %s133, %s136
    %p142 = scmp.eq.s32.totalorder %s13, 0
    %p143 = por %p141, %p142
    %p144 = scmp.ne.s32.totalorder %s133, %s136
    %p145 = scmp.eq.s32.totalorder %s18, 1
    %p146 = por %p144, %p145
    %p147 = scmp.ne.s32.totalorder %s136, %s137
    %p148 = scmp.eq.s32.totalorder %s18, 0
    %p149 = por %p147, %p148
    %p150 = scmp.ne.s32.totalorder %s136, %s137
    %p151 = scmp.eq.s32.totalorder %s19, 1
    %p152 = por %p150, %p151
    %p154 = scmp.ne.s32.totalorder %s137, %s153
    %p155 = scmp.eq.s32.totalorder %s19, 0
    %p156 = por %p154, %p155
    %s157 = ssub.s32 %s13, %s20
    %p158 = scmp.eq.s32.totalorder %s157, 0
    %s160 = sadd.s32 %s159, 1
    %s161 = scalar_select %p158, %s159, %s160
    %p164 = pneg %p158
    %p165 = scmp.eq.s32.totalorder %s13, 1
    %p166 = por %p164, %p165
    %p167 = scmp.ne.s32.totalorder %s159, %s162
    %p168 = scmp.eq.s32.totalorder %s13, 0
    %p169 = por %p167, %p168
    %p170 = scmp.ne.s32.totalorder %s159, %s162
    %p171 = scmp.eq.s32.totalorder %s18, 1
    %p172 = por %p170, %p171
    %p173 = scmp.ne.s32.totalorder %s162, %s163
    %p174 = scmp.eq.s32.totalorder %s18, 0
    %p175 = por %p173, %p174
    %p176 = scmp.ne.s32.totalorder %s162, %s163
    %p177 = scmp.eq.s32.totalorder %s19, 1
    %p178 = por %p176, %p177
    %p180 = scmp.ne.s32.totalorder %s163, %s179
    %p181 = scmp.eq.s32.totalorder %s19, 0
    %p182 = por %p180, %p181
    %p183 = scmp.le.s32.totalorder 1, %s13
    %p184 = scmp.lt.s32.totalorder %s13, 3
    %p185 = pnand %p183, %p184
    %p186 = pneg %p185
    // Predicated region
    $region9: #{_forward_impl.1} parent=5 // pred_check
      _
    $region10: #{_forward_impl.1} parent=5 // pred_check_branch
      %188 = sbr.rel (%p185) target = $region12
    $region11: #{_forward_impl.1} parent=5 // pred_region
      %s189 = ssub.s32 %s13, 1
      // Predicated region
      $region13: #{_forward_impl.1} parent=11 // pred_check
        %p190 = pneg %p60
      $region14: #{_forward_impl.1} parent=11 // pred_check_branch
        %192 = sbr.rel (%p190) target = $region16
      $region15: #{_forward_impl.1} parent=11 // pred_region
        _
      $region16: #{_forward_impl.1} parent=11 // pred_fallthru
        _
      // Predicated region
      $region17: #{_forward_impl.1} parent=11 // pred_check
        %p193 = pneg %p81
      $region18: #{_forward_impl.1} parent=11 // pred_check_branch
        %195 = sbr.rel (%p193) target = $region20
      $region19: #{_forward_impl.1} parent=11 // pred_region
        _
      $region20: #{_forward_impl.1} parent=11 // pred_fallthru
        _
      // Predicated region
      $region21: #{_forward_impl.1} parent=11 // pred_check
        %p196 = pneg %p102
      $region22: #{_forward_impl.1} parent=11 // pred_check_branch
        %198 = sbr.rel (%p196) target = $region24
      $region23: #{_forward_impl.1} parent=11 // pred_region
        _
      $region24: #{_forward_impl.1} parent=11 // pred_fallthru
        _
      // Predicated region
      $region25: #{_forward_impl.1} parent=11 // pred_check
        %p199 = pneg %p123
      $region26: #{_forward_impl.1} parent=11 // pred_check_branch
        %201 = sbr.rel (%p199) target = $region28
      $region27: #{_forward_impl.1} parent=11 // pred_region
        _
      $region28: #{_forward_impl.1} parent=11 // pred_fallthru
        _
    $region12: #{_forward_impl.1} parent=5 // pred_fallthru
      _
    %p202 = scmp.lt.s32.totalorder %s13, 2
    // Predicated region
    $region29: #{_forward_impl.1} parent=5 // pred_check
      %p203 = pneg %p202
    $region30: #{_forward_impl.1} parent=5 // pred_check_branch
      %205 = sbr.rel (%p203) target = $region32
    $region31: #{_forward_impl.1} parent=5 // pred_region
      // Predicated region
      $region33: #{_forward_impl.1} parent=31 // pred_check
        %p206 = pneg %p33
      $region34: #{_forward_impl.1} parent=31 // pred_check_branch
        %208 = sbr.rel (%p206) target = $region36
      $region35: #{_forward_impl.1} parent=31 // pred_region
        %p209 = scmp.lt.s32.totalorder %s13, 1
        %s210 = scalar_select %p209, %s13, 1
        %s211 = smul.addr %s210, 2
        %s212 = smul.addr %s211, 4
        %s213 = scalar_lea.vmem %s0, %s212
      $region36: #{_forward_impl.1} parent=31 // pred_fallthru
        _
    $region32: #{_forward_impl.1} parent=5 // pred_fallthru
      _
    %p214 = scmp.le.s32.totalorder 1, %s13
    %p215 = scmp.lt.s32.totalorder %s13, 3
    %p216 = pnand %p214, %p215
    %p217 = pneg %p216
    // Predicated region
    $region37: #{_forward_impl.1} parent=5 // pred_check
      _
    $region38: #{_forward_impl.1} parent=5 // pred_check_branch
      %219 = sbr.rel (%p216) target = $region40
    $region39: #{_forward_impl.1} parent=5 // pred_region
      %s220 = ssub.s32 %s13, 1
      %p221 = scmp.lt.s32.totalorder %s18, 1
      %s222 = scalar_select %p221, %s18, 1
      %s223 = smul.addr %s222, 2
      %s224 = smul.addr %s223, 4
      %s225 = scalar_lea.vmem %s0, %s224
      %p226 = pneg %p39
      %p227 = pneg %p36
      %p228 = pneg %p60
      %p229 = pneg %p57
      %p230 = pneg %p81
      %p231 = pneg %p78
      %p232 = pneg %p102
      %p233 = pneg %p99
      %p234 = pneg %p123
      %p235 = pneg %p120
      %p236 = pneg %p149
      %p237 = pneg %p146
      %p238 = scmp.lt.s32.totalorder %s18, 1
      %s239 = scalar_select %p238, %s18, 1
      %s240 = smul.addr %s239, 2
      %s241 = smul.addr %s240, 8
      %s242 = scalar_lea.vmem %s5, %s241
      %p243 = pneg %p175
      %p244 = pneg %p172
      %p245 = scmp.lt.s32.totalorder %s18, 1
      %s246 = scalar_select %p245, %s18, 1
      %s247 = smul.addr %s246, 4
      %s248 = smul.addr %s247, 8
      %s249 = scalar_lea.vmem %s6, %s248
      %p250 = scmp.lt.s32.totalorder %s18, 1
      %s251 = scalar_select %p250, %s18, 1
      %s252 = smul.addr %s251, 2
      %s253 = smul.addr %s252, 4
      %s254 = scalar_lea.vmem %s0, %s253
      %p255 = scmp.lt.s32.totalorder %s18, 1
      %s256 = scalar_select %p255, %s18, 1
      %s257 = smul.addr %s256, 2
      %s258 = smul.addr %s257, 8
      %s259 = scalar_lea.vmem %s5, %s258
      %p260 = scmp.lt.s32.totalorder %s18, 1
      %s261 = scalar_select %p260, %s18, 1
      %s262 = smul.addr %s261, 4
      %s263 = smul.addr %s262, 8
      %s264 = scalar_lea.vmem %s6, %s263
      %v265 = vld [vmem:[%s254] sm:$0xff]
      %v266 = vlaneseq
      %v267 = vand.u32 %v266, 127
      %v268 = vadd.s32 %v267, 128
      %v269 = vand.u32 %v267, 15
      %v270 = vand.u32 %v268, 15
      %vm271 = vcmp.ge.s32.totalorder %v267, 16
      %vm272 = vcmp.ge.s32.totalorder %v268, 16
      %vm273 = vcmp.lt.s32.totalorder %v267, 240
      %vm274 = vcmp.lt.s32.totalorder %v268, 240
      %vm275 = vcmp.ge.s32.totalorder %v269, 1
      %vm276 = vcmp.ge.s32.totalorder %v270, 1
      %vm277 = vcmp.le.s32.totalorder %v269, 14
      %vm278 = vcmp.le.s32.totalorder %v270, 14
      %v280 = vcombine.high %v265, %v265
      %282 = vrot.lane.b32.xlu0 %v265, 17
      %v283 = vpop.permute.xlu0 %282
      %284 = vrot.lane.b32.xlu0 %v280, 17
      %v285 = vpop.permute.xlu0 %284
      %vm286 = vcmp.lt.s32.totalorder %v267, 17
      %v287 = vsel %vm286, %v283, %v285
      %v288 = vsel %vm286, %v285, %v283
      %vm289 = vmand %vm271, %vm275
      %vm290 = vmand %vm272, %vm276
      %v291 = vsel %vm289, %v288, 0.0
      %v292 = vsel %vm290, %v287, 0.0
      %v293 = vld [vmem:[%s1] sm:$0xff]
      %294 = vrot.lane.b32.xlu0 %v265, 16
      %v295 = vpop.permute.xlu0 %294
      %296 = vrot.lane.b32.xlu0 %v280, 16
      %v297 = vpop.permute.xlu0 %296
      %vm298 = vcmp.lt.s32.totalorder %v267, 16
      %v299 = vsel %vm298, %v295, %v297
      %v300 = vsel %vm298, %v297, %v295
      %v301 = vsel %vm271, %v300, 0.0
      %v302 = vsel %vm272, %v299, 0.0
      %s303 = scalar_lea.vmem %s1, 8
      %v304 = vld [vmem:[%s303] sm:$0xff]
      %vm305 = vcmask 31744
      %v307 = vsel %vm305, %v304, 0
      %vm309 = vcmask 1043456
      %v311 = vsel %vm309, %v301, 0
      %v314 = vsel %vm309, %v302, 0
      %316 = vmatprep.subr.mxu0 %v314
      %317 = vmatpush1.msra.mxu0 %v311
      %318 = vmatprep.subr.mxu0 0.0
      %319 = vmatpush1.msra.mxu0 0.0
      %320 = vmatprep.subr.mxu0 0.0
      %321 = vmatpush1.msra.mxu0 0.0
      %322 = vmatprep.subr.mxu0 0.0
      %323 = vmatpush1.msra.mxu0 0.0
      %324 = vmatprep.subr.mxu0 0.0
      %325 = vmatpush1.msra.mxu0 0.0
      %326 = vmatprep.subr.mxu0 0.0
      %327 = vmatpush1.msra.mxu0 0.0
      %328 = vmatprep.subr.mxu0 0.0
      %329 = vmatpush1.msra.mxu0 0.0
      %330 = vmatprep.subr.mxu0 0.0
      %331 = vmatpush1.msra.mxu0 0.0
      %332 = vmatprep.subr.mxu0 0.0
      %333 = vmatpush1.msra.mxu0 0.0
      %334 = vmatprep.subr.mxu0 0.0
      %335 = vmatpush1.msra.mxu0 0.0
      %336 = vmatprep.subr.mxu0 0.0
      %337 = vmatpush1.msra.mxu0 0.0
      %338 = vmatprep.subr.mxu0 0.0
      %339 = vmatpush1.msra.mxu0 0.0
      %340 = vmatprep.subr.mxu0 0.0
      %341 = vmatpush1.msra.mxu0 0.0
      %342 = vmatprep.subr.mxu0 0.0
      %343 = vmatpush1.msra.mxu0 0.0
      %344 = vmatprep.subr.mxu0 0.0
      %345 = vmatpush1.msra.mxu0 0.0
      %346 = vmatprep.subr.mxu0 0.0
      %347 = vmatpush1.msra.mxu0 0.0
      %348 = vmatprep.subr.mxu0 0.0
      %349 = vmatpush1.msra.mxu0 0.0
      %350 = vmatprep.subr.mxu0 0.0
      %351 = vmatpush1.msra.mxu0 0.0
      %352 = vmatprep.subr.mxu0 0.0
      %353 = vmatpush1.msra.mxu0 0.0
      %354 = vmatprep.subr.mxu0 0.0
      %355 = vmatpush1.msra.mxu0 0.0
      %356 = vmatprep.subr.mxu0 0.0
      %357 = vmatpush1.msra.mxu0 0.0
      %358 = vmatprep.subr.mxu0 0.0
      %359 = vmatpush1.msra.mxu0 0.0
      %360 = vmatprep.subr.mxu0 0.0
      %361 = vmatpush1.msra.mxu0 0.0
      %362 = vmatprep.subr.mxu0 0.0
      %363 = vmatpush1.msra.mxu0 0.0
      %364 = vmatprep.subr.mxu0 0.0
      %365 = vmatpush1.msra.mxu0 0.0
      %366 = vmatprep.subr.mxu0 0.0
      %367 = vmatpush1.msra.mxu0 0.0
      %368 = vmatprep.subr.mxu0 0.0
      %369 = vmatpush1.msra.mxu0 0.0
      %370 = vmatprep.subr.mxu0 0.0
      %371 = vmatpush1.msra.mxu0 0.0
      %372 = vmatprep.subr.mxu0 0.0
      %373 = vmatpush1.msra.mxu0 0.0
      %374 = vmatprep.subr.mxu0 0.0
      %375 = vmatpush1.msra.mxu0 0.0
      %376 = vmatprep.subr.mxu0 0.0
      %377 = vmatpush1.msra.mxu0 0.0
      %378 = vmatprep.subr.mxu0 0.0
      %379 = vmatpush1.msra.mxu0 0.0
      %380 = vmatprep.mubr.f32.mxu0 0.0
      %381 = vmatmul.mubr.f32.gmra.mrb[0].mxu0 %v307
      %v382 = vpop.f32.mrb[0].mxu0
      %v383 = vadd.f32 0.0, %v382
      %v384 = vpop.f32.mrb[0].mxu0
      %v385 = vadd.f32 0.0, %v384
      %386 = vdwg.mxu0
      %v388 = vsel %vm305, %v293, 0
      %v391 = vsel %vm309, %v291, 0
      %v394 = vsel %vm309, %v292, 0
      %396 = vmatprep.subr.mxu0 %v394
      %397 = vmatpush1.msra.mxu0 %v391
      %398 = vmatprep.subr.mxu0 0.0
      %399 = vmatpush1.msra.mxu0 0.0
      %400 = vmatprep.subr.mxu0 0.0
      %401 = vmatpush1.msra.mxu0 0.0
      %402 = vmatprep.subr.mxu0 0.0
      %403 = vmatpush1.msra.mxu0 0.0
      %404 = vmatprep.subr.mxu0 0.0
      %405 = vmatpush1.msra.mxu0 0.0
      %406 = vmatprep.subr.mxu0 0.0
      %407 = vmatpush1.msra.mxu0 0.0
      %408 = vmatprep.subr.mxu0 0.0
      %409 = vmatpush1.msra.mxu0 0.0
      %410 = vmatprep.subr.mxu0 0.0
      %411 = vmatpush1.msra.mxu0 0.0
      %412 = vmatprep.subr.mxu0 0.0
      %413 = vmatpush1.msra.mxu0 0.0
      %414 = vmatprep.subr.mxu0 0.0
      %415 = vmatpush1.msra.mxu0 0.0
      %416 = vmatprep.subr.mxu0 0.0
      %417 = vmatpush1.msra.mxu0 0.0
      %418 = vmatprep.subr.mxu0 0.0
      %419 = vmatpush1.msra.mxu0 0.0
      %420 = vmatprep.subr.mxu0 0.0
      %421 = vmatpush1.msra.mxu0 0.0
      %422 = vmatprep.subr.mxu0 0.0
      %423 = vmatpush1.msra.mxu0 0.0
      %424 = vmatprep.subr.mxu0 0.0
      %425 = vmatpush1.msra.mxu0 0.0
      %426 = vmatprep.subr.mxu0 0.0
      %427 = vmatpush1.msra.mxu0 0.0
      %428 = vmatprep.subr.mxu0 0.0
      %429 = vmatpush1.msra.mxu0 0.0
      %430 = vmatprep.subr.mxu0 0.0
      %431 = vmatpush1.msra.mxu0 0.0
      %432 = vmatprep.subr.mxu0 0.0
      %433 = vmatpush1.msra.mxu0 0.0
      %434 = vmatprep.subr.mxu0 0.0
      %435 = vmatpush1.msra.mxu0 0.0
      %436 = vmatprep.subr.mxu0 0.0
      %437 = vmatpush1.msra.mxu0 0.0
      %438 = vmatprep.subr.mxu0 0.0
      %439 = vmatpush1.msra.mxu0 0.0
      %440 = vmatprep.subr.mxu0 0.0
      %441 = vmatpush1.msra.mxu0 0.0
      %442 = vmatprep.subr.mxu0 0.0
      %443 = vmatpush1.msra.mxu0 0.0
      %444 = vmatprep.subr.mxu0 0.0
      %445 = vmatpush1.msra.mxu0 0.0
      %446 = vmatprep.subr.mxu0 0.0
      %447 = vmatpush1.msra.mxu0 0.0
      %448 = vmatprep.subr.mxu0 0.0
      %449 = vmatpush1.msra.mxu0 0.0
      %450 = vmatprep.subr.mxu0 0.0
      %451 = vmatpush1.msra.mxu0 0.0
      %452 = vmatprep.subr.mxu0 0.0
      %453 = vmatpush1.msra.mxu0 0.0
      %454 = vmatprep.subr.mxu0 0.0
      %455 = vmatpush1.msra.mxu0 0.0
      %456 = vmatprep.subr.mxu0 0.0
      %457 = vmatpush1.msra.mxu0 0.0
      %458 = vmatprep.subr.mxu0 0.0
      %459 = vmatpush1.msra.mxu0 0.0
      %460 = vmatprep.mubr.f32.mxu0 0.0
      %461 = vmatmul.mubr.f32.gmra.mrb[0].mxu0 %v388
      %v462 = vpop.f32.mrb[0].mxu0
      %v463 = vadd.f32 %v383, %v462
      %v464 = vpop.f32.mrb[0].mxu0
      %v465 = vadd.f32 %v385, %v464
      %466 = vdwg.mxu0
      %467 = vrot.lane.b32.xlu0 %v265, 15
      %v468 = vpop.permute.xlu0 %467
      %469 = vrot.lane.b32.xlu0 %v280, 15
      %v470 = vpop.permute.xlu0 %469
      %vm471 = vcmp.lt.s32.totalorder %v267, 15
      %v472 = vsel %vm471, %v468, %v470
      %v473 = vsel %vm471, %v470, %v468
      %vm474 = vmand %vm271, %vm277
      %vm475 = vmand %vm272, %vm278
      %v476 = vsel %vm474, %v473, 0.0
      %v477 = vsel %vm475, %v472, 0.0
      %s478 = scalar_lea.vmem %s1, 16
      %v479 = vld [vmem:[%s478] sm:$0xff]
      %v481 = vsel %vm305, %v479, 0
      %v484 = vsel %vm309, %v476, 0
      %v487 = vsel %vm309, %v477, 0
      %489 = vmatprep.subr.mxu0 %v487
      %490 = vmatpush1.msra.mxu0 %v484
      %491 = vmatprep.subr.mxu0 0.0
      %492 = vmatpush1.msra.mxu0 0.0
      %493 = vmatprep.subr.mxu0 0.0
      %494 = vmatpush1.msra.mxu0 0.0
      %495 = vmatprep.subr.mxu0 0.0
      %496 = vmatpush1.msra.mxu0 0.0
      %497 = vmatprep.subr.mxu0 0.0
      %498 = vmatpush1.msra.mxu0 0.0
      %499 = vmatprep.subr.mxu0 0.0
      %500 = vmatpush1.msra.mxu0 0.0
      %501 = vmatprep.subr.mxu0 0.0
      %502 = vmatpush1.msra.mxu0 0.0
      %503 = vmatprep.subr.mxu0 0.0
      %504 = vmatpush1.msra.mxu0 0.0
      %505 = vmatprep.subr.mxu0 0.0
      %506 = vmatpush1.msra.mxu0 0.0
      %507 = vmatprep.subr.mxu0 0.0
      %508 = vmatpush1.msra.mxu0 0.0
      %509 = vmatprep.subr.mxu0 0.0
      %510 = vmatpush1.msra.mxu0 0.0
      %511 = vmatprep.subr.mxu0 0.0
      %512 = vmatpush1.msra.mxu0 0.0
      %513 = vmatprep.subr.mxu0 0.0
      %514 = vmatpush1.msra.mxu0 0.0
      %515 = vmatprep.subr.mxu0 0.0
      %516 = vmatpush1.msra.mxu0 0.0
      %517 = vmatprep.subr.mxu0 0.0
      %518 = vmatpush1.msra.mxu0 0.0
      %519 = vmatprep.subr.mxu0 0.0
      %520 = vmatpush1.msra.mxu0 0.0
      %521 = vmatprep.subr.mxu0 0.0
      %522 = vmatpush1.msra.mxu0 0.0
      %523 = vmatprep.subr.mxu0 0.0
      %524 = vmatpush1.msra.mxu0 0.0
      %525 = vmatprep.subr.mxu0 0.0
      %526 = vmatpush1.msra.mxu0 0.0
      %527 = vmatprep.subr.mxu0 0.0
      %528 = vmatpush1.msra.mxu0 0.0
      %529 = vmatprep.subr.mxu0 0.0
      %530 = vmatpush1.msra.mxu0 0.0
      %531 = vmatprep.subr.mxu0 0.0
      %532 = vmatpush1.msra.mxu0 0.0
      %533 = vmatprep.subr.mxu0 0.0
      %534 = vmatpush1.msra.mxu0 0.0
      %535 = vmatprep.subr.mxu0 0.0
      %536 = vmatpush1.msra.mxu0 0.0
      %537 = vmatprep.subr.mxu0 0.0
      %538 = vmatpush1.msra.mxu0 0.0
      %539 = vmatprep.subr.mxu0 0.0
      %540 = vmatpush1.msra.mxu0 0.0
      %541 = vmatprep.subr.mxu0 0.0
      %542 = vmatpush1.msra.mxu0 0.0
      %543 = vmatprep.subr.mxu0 0.0
      %544 = vmatpush1.msra.mxu0 0.0
      %545 = vmatprep.subr.mxu0 0.0
      %546 = vmatpush1.msra.mxu0 0.0
      %547 = vmatprep.subr.mxu0 0.0
      %548 = vmatpush1.msra.mxu0 0.0
      %549 = vmatprep.subr.mxu0 0.0
      %550 = vmatpush1.msra.mxu0 0.0
      %551 = vmatprep.subr.mxu0 0.0
      %552 = vmatpush1.msra.mxu0 0.0
      %553 = vmatprep.mubr.f32.mxu0 0.0
      %554 = vmatmul.mubr.f32.gmra.mrb[0].mxu0 %v481
      %v555 = vpop.f32.mrb[0].mxu0
      %v556 = vadd.f32 0.0, %v555
      %v557 = vpop.f32.mrb[0].mxu0
      %v558 = vadd.f32 0.0, %v557
      %559 = vdwg.mxu0
      %v560 = vadd.f32 %v463, %v556
      %v561 = vadd.f32 %v465, %v558
      %562 = vrot.lane.b32.xlu0 %v265, 1
      %v563 = vpop.permute.xlu0 %562
      %564 = vrot.lane.b32.xlu0 %v280, 1
      %v565 = vpop.permute.xlu0 %564
      %vm566 = vcmp.lt.s32.totalorder %v267, 1
      %v567 = vsel %vm566, %v563, %v565
      %v568 = vsel %vm566, %v565, %v563
      %v569 = vsel %vm275, %v568, 0.0
      %v570 = vsel %vm276, %v567, 0.0
      %s571 = scalar_lea.vmem %s1, 24
      %v572 = vld [vmem:[%s571] sm:$0xff]
      %v574 = vsel %vm305, %v572, 0
      %v577 = vsel %vm309, %v569, 0
      %v580 = vsel %vm309, %v570, 0
      %582 = vmatprep.subr.mxu0 %v580
      %583 = vmatpush1.msra.mxu0 %v577
      %584 = vmatprep.subr.mxu0 0.0
      %585 = vmatpush1.msra.mxu0 0.0
      %586 = vmatprep.subr.mxu0 0.0
      %587 = vmatpush1.msra.mxu0 0.0
      %588 = vmatprep.subr.mxu0 0.0
      %589 = vmatpush1.msra.mxu0 0.0
      %590 = vmatprep.subr.mxu0 0.0
      %591 = vmatpush1.msra.mxu0 0.0
      %592 = vmatprep.subr.mxu0 0.0
      %593 = vmatpush1.msra.mxu0 0.0
      %594 = vmatprep.subr.mxu0 0.0
      %595 = vmatpush1.msra.mxu0 0.0
      %596 = vmatprep.subr.mxu0 0.0
      %597 = vmatpush1.msra.mxu0 0.0
      %598 = vmatprep.subr.mxu0 0.0
      %599 = vmatpush1.msra.mxu0 0.0
      %600 = vmatprep.subr.mxu0 0.0
      %601 = vmatpush1.msra.mxu0 0.0
      %602 = vmatprep.subr.mxu0 0.0
      %603 = vmatpush1.msra.mxu0 0.0
      %604 = vmatprep.subr.mxu0 0.0
      %605 = vmatpush1.msra.mxu0 0.0
      %606 = vmatprep.subr.mxu0 0.0
      %607 = vmatpush1.msra.mxu0 0.0
      %608 = vmatprep.subr.mxu0 0.0
      %609 = vmatpush1.msra.mxu0 0.0
      %610 = vmatprep.subr.mxu0 0.0
      %611 = vmatpush1.msra.mxu0 0.0
      %612 = vmatprep.subr.mxu0 0.0
      %613 = vmatpush1.msra.mxu0 0.0
      %614 = vmatprep.subr.mxu0 0.0
      %615 = vmatpush1.msra.mxu0 0.0
      %616 = vmatprep.subr.mxu0 0.0
      %617 = vmatpush1.msra.mxu0 0.0
      %618 = vmatprep.subr.mxu0 0.0
      %619 = vmatpush1.msra.mxu0 0.0
      %620 = vmatprep.subr.mxu0 0.0
      %621 = vmatpush1.msra.mxu0 0.0
      %622 = vmatprep.subr.mxu0 0.0
      %623 = vmatpush1.msra.mxu0 0.0
      %624 = vmatprep.subr.mxu0 0.0
      %625 = vmatpush1.msra.mxu0 0.0
      %626 = vmatprep.subr.mxu0 0.0
      %627 = vmatpush1.msra.mxu0 0.0
      %628 = vmatprep.subr.mxu0 0.0
      %629 = vmatpush1.msra.mxu0 0.0
      %630 = vmatprep.subr.mxu0 0.0
      %631 = vmatpush1.msra.mxu0 0.0
      %632 = vmatprep.subr.mxu0 0.0
      %633 = vmatpush1.msra.mxu0 0.0
      %634 = vmatprep.subr.mxu0 0.0
      %635 = vmatpush1.msra.mxu0 0.0
      %636 = vmatprep.subr.mxu0 0.0
      %637 = vmatpush1.msra.mxu0 0.0
      %638 = vmatprep.subr.mxu0 0.0
      %639 = vmatpush1.msra.mxu0 0.0
      %640 = vmatprep.subr.mxu0 0.0
      %641 = vmatpush1.msra.mxu0 0.0
      %642 = vmatprep.subr.mxu0 0.0
      %643 = vmatpush1.msra.mxu0 0.0
      %644 = vmatprep.subr.mxu0 0.0
      %645 = vmatpush1.msra.mxu0 0.0
      %646 = vmatprep.mubr.f32.mxu0 0.0
      %647 = vmatmul.mubr.f32.gmra.mrb[0].mxu0 %v574
      %v648 = vpop.f32.mrb[0].mxu0
      %v649 = vadd.f32 0.0, %v648
      %v650 = vpop.f32.mrb[0].mxu0
      %v651 = vadd.f32 0.0, %v650
      %652 = vdwg.mxu0
      %v653 = vadd.f32 %v560, %v649
      %v654 = vadd.f32 %v561, %v651
      %s655 = scalar_lea.vmem %s1, 32
      %v656 = vld [vmem:[%s655] sm:$0xff]
      %v658 = vsel %vm305, %v656, 0
      %v660 = vsel %vm309, %v265, 0
      %v662 = vsel %vm309, %v280, 0
      %664 = vmatprep.subr.mxu0 %v662
      %665 = vmatpush1.msra.mxu0 %v660
      %666 = vmatprep.subr.mxu0 0.0
      %667 = vmatpush1.msra.mxu0 0.0
      %668 = vmatprep.subr.mxu0 0.0
      %669 = vmatpush1.msra.mxu0 0.0
      %670 = vmatprep.subr.mxu0 0.0
      %671 = vmatpush1.msra.mxu0 0.0
      %672 = vmatprep.subr.mxu0 0.0
      %673 = vmatpush1.msra.mxu0 0.0
      %674 = vmatprep.subr.mxu0 0.0
      %675 = vmatpush1.msra.mxu0 0.0
      %676 = vmatprep.subr.mxu0 0.0
      %677 = vmatpush1.msra.mxu0 0.0
      %678 = vmatprep.subr.mxu0 0.0
      %679 = vmatpush1.msra.mxu0 0.0
      %680 = vmatprep.subr.mxu0 0.0
      %681 = vmatpush1.msra.mxu0 0.0
      %682 = vmatprep.subr.mxu0 0.0
      %683 = vmatpush1.msra.mxu0 0.0
      %684 = vmatprep.subr.mxu0 0.0
      %685 = vmatpush1.msra.mxu0 0.0
      %686 = vmatprep.subr.mxu0 0.0
      %687 = vmatpush1.msra.mxu0 0.0
      %688 = vmatprep.subr.mxu0 0.0
      %689 = vmatpush1.msra.mxu0 0.0
      %690 = vmatprep.subr.mxu0 0.0
      %691 = vmatpush1.msra.mxu0 0.0
      %692 = vmatprep.subr.mxu0 0.0
      %693 = vmatpush1.msra.mxu0 0.0
      %694 = vmatprep.subr.mxu0 0.0
      %695 = vmatpush1.msra.mxu0 0.0
      %696 = vmatprep.subr.mxu0 0.0
      %697 = vmatpush1.msra.mxu0 0.0
      %698 = vmatprep.subr.mxu0 0.0
      %699 = vmatpush1.msra.mxu0 0.0
      %700 = vmatprep.subr.mxu0 0.0
      %701 = vmatpush1.msra.mxu0 0.0
      %702 = vmatprep.subr.mxu0 0.0
      %703 = vmatpush1.msra.mxu0 0.0
      %704 = vmatprep.subr.mxu0 0.0
      %705 = vmatpush1.msra.mxu0 0.0
      %706 = vmatprep.subr.mxu0 0.0
      %707 = vmatpush1.msra.mxu0 0.0
      %708 = vmatprep.subr.mxu0 0.0
      %709 = vmatpush1.msra.mxu0 0.0
      %710 = vmatprep.subr.mxu0 0.0
      %711 = vmatpush1.msra.mxu0 0.0
      %712 = vmatprep.subr.mxu0 0.0
      %713 = vmatpush1.msra.mxu0 0.0
      %714 = vmatprep.subr.mxu0 0.0
      %715 = vmatpush1.msra.mxu0 0.0
      %716 = vmatprep.subr.mxu0 0.0
      %717 = vmatpush1.msra.mxu0 0.0
      %718 = vmatprep.subr.mxu0 0.0
      %719 = vmatpush1.msra.mxu0 0.0
      %720 = vmatprep.subr.mxu0 0.0
      %721 = vmatpush1.msra.mxu0 0.0
      %722 = vmatprep.subr.mxu0 0.0
      %723 = vmatpush1.msra.mxu0 0.0
      %724 = vmatprep.subr.mxu0 0.0
      %725 = vmatpush1.msra.mxu0 0.0
      %726 = vmatprep.subr.mxu0 0.0
      %727 = vmatpush1.msra.mxu0 0.0
      %728 = vmatprep.mubr.f32.mxu0 0.0
      %729 = vmatmul.mubr.f32.gmra.mrb[0].mxu0 %v658
      %v730 = vpop.f32.mrb[0].mxu0
      %v731 = vadd.f32 0.0, %v730
      %v732 = vpop.f32.mrb[0].mxu0
      %v733 = vadd.f32 0.0, %v732
      %734 = vdwg.mxu0
      %v735 = vadd.f32 %v653, %v731
      %v736 = vadd.f32 %v654, %v733
      %737 = vrot.lane.b32.xlu0 %v265, 127
      %v738 = vpop.permute.xlu0 %737
      %739 = vrot.lane.b32.xlu0 %v280, 127
      %v740 = vpop.permute.xlu0 %739
      %vm741 = vcmp.lt.s32.totalorder %v267, 127
      %v742 = vsel %vm741, %v738, %v740
      %v743 = vsel %vm741, %v740, %v738
      %v744 = vsel %vm277, %v742, 0.0
      %v745 = vsel %vm278, %v743, 0.0
      %s746 = scalar_lea.vmem %s1, 40
      %v747 = vld [vmem:[%s746] sm:$0xff]
      %v749 = vsel %vm305, %v747, 0
      %v752 = vsel %vm309, %v744, 0
      %v755 = vsel %vm309, %v745, 0
      %757 = vmatprep.subr.mxu0 %v755
      %758 = vmatpush1.msra.mxu0 %v752
      %759 = vmatprep.subr.mxu0 0.0
      %760 = vmatpush1.msra.mxu0 0.0
      %761 = vmatprep.subr.mxu0 0.0
      %762 = vmatpush1.msra.mxu0 0.0
      %763 = vmatprep.subr.mxu0 0.0
      %764 = vmatpush1.msra.mxu0 0.0
      %765 = vmatprep.subr.mxu0 0.0
      %766 = vmatpush1.msra.mxu0 0.0
      %767 = vmatprep.subr.mxu0 0.0
      %768 = vmatpush1.msra.mxu0 0.0
      %769 = vmatprep.subr.mxu0 0.0
      %770 = vmatpush1.msra.mxu0 0.0
      %771 = vmatprep.subr.mxu0 0.0
      %772 = vmatpush1.msra.mxu0 0.0
      %773 = vmatprep.subr.mxu0 0.0
      %774 = vmatpush1.msra.mxu0 0.0
      %775 = vmatprep.subr.mxu0 0.0
      %776 = vmatpush1.msra.mxu0 0.0
      %777 = vmatprep.subr.mxu0 0.0
      %778 = vmatpush1.msra.mxu0 0.0
      %779 = vmatprep.subr.mxu0 0.0
      %780 = vmatpush1.msra.mxu0 0.0
      %781 = vmatprep.subr.mxu0 0.0
      %782 = vmatpush1.msra.mxu0 0.0
      %783 = vmatprep.subr.mxu0 0.0
      %784 = vmatpush1.msra.mxu0 0.0
      %785 = vmatprep.subr.mxu0 0.0
      %786 = vmatpush1.msra.mxu0 0.0
      %787 = vmatprep.subr.mxu0 0.0
      %788 = vmatpush1.msra.mxu0 0.0
      %789 = vmatprep.subr.mxu0 0.0
      %790 = vmatpush1.msra.mxu0 0.0
      %791 = vmatprep.subr.mxu0 0.0
      %792 = vmatpush1.msra.mxu0 0.0
      %793 = vmatprep.subr.mxu0 0.0
      %794 = vmatpush1.msra.mxu0 0.0
      %795 = vmatprep.subr.mxu0 0.0
      %796 = vmatpush1.msra.mxu0 0.0
      %797 = vmatprep.subr.mxu0 0.0
      %798 = vmatpush1.msra.mxu0 0.0
      %799 = vmatprep.subr.mxu0 0.0
      %800 = vmatpush1.msra.mxu0 0.0
      %801 = vmatprep.subr.mxu0 0.0
      %802 = vmatpush1.msra.mxu0 0.0
      %803 = vmatprep.subr.mxu0 0.0
      %804 = vmatpush1.msra.mxu0 0.0
      %805 = vmatprep.subr.mxu0 0.0
      %806 = vmatpush1.msra.mxu0 0.0
      %807 = vmatprep.subr.mxu0 0.0
      %808 = vmatpush1.msra.mxu0 0.0
      %809 = vmatprep.subr.mxu0 0.0
      %810 = vmatpush1.msra.mxu0 0.0
      %811 = vmatprep.subr.mxu0 0.0
      %812 = vmatpush1.msra.mxu0 0.0
      %813 = vmatprep.subr.mxu0 0.0
      %814 = vmatpush1.msra.mxu0 0.0
      %815 = vmatprep.subr.mxu0 0.0
      %816 = vmatpush1.msra.mxu0 0.0
      %817 = vmatprep.subr.mxu0 0.0
      %818 = vmatpush1.msra.mxu0 0.0
      %819 = vmatprep.subr.mxu0 0.0
      %820 = vmatpush1.msra.mxu0 0.0
      %821 = vmatprep.mubr.f32.mxu0 0.0
      %822 = vmatmul.mubr.f32.gmra.mrb[0].mxu0 %v749
      %v823 = vpop.f32.mrb[0].mxu0
      %v824 = vadd.f32 0.0, %v823
      %v825 = vpop.f32.mrb[0].mxu0
      %v826 = vadd.f32 0.0, %v825
      %827 = vdwg.mxu0
      %v828 = vadd.f32 %v735, %v824
      %v829 = vadd.f32 %v736, %v826
      %830 = vrot.lane.b32.xlu0 %v265, 113
      %v831 = vpop.permute.xlu0 %830
      %832 = vrot.lane.b32.xlu0 %v280, 113
      %v833 = vpop.permute.xlu0 %832
      %vm834 = vcmp.lt.s32.totalorder %v267, 113
      %v835 = vsel %vm834, %v831, %v833
      %v836 = vsel %vm834, %v833, %v831
      %vm837 = vmand %vm273, %vm275
      %vm838 = vmand %vm274, %vm276
      %v839 = vsel %vm837, %v835, 0.0
      %v840 = vsel %vm838, %v836, 0.0
      %s841 = scalar_lea.vmem %s1, 48
      %v842 = vld [vmem:[%s841] sm:$0xff]
      %v844 = vsel %vm305, %v842, 0
      %v847 = vsel %vm309, %v839, 0
      %v850 = vsel %vm309, %v840, 0
      %852 = vmatprep.subr.mxu0 %v850
      %853 = vmatpush1.msra.mxu0 %v847
      %854 = vmatprep.subr.mxu0 0.0
      %855 = vmatpush1.msra.mxu0 0.0
      %856 = vmatprep.subr.mxu0 0.0
      %857 = vmatpush1.msra.mxu0 0.0
      %858 = vmatprep.subr.mxu0 0.0
      %859 = vmatpush1.msra.mxu0 0.0
      %860 = vmatprep.subr.mxu0 0.0
      %861 = vmatpush1.msra.mxu0 0.0
      %862 = vmatprep.subr.mxu0 0.0
      %863 = vmatpush1.msra.mxu0 0.0
      %864 = vmatprep.subr.mxu0 0.0
      %865 = vmatpush1.msra.mxu0 0.0
      %866 = vmatprep.subr.mxu0 0.0
      %867 = vmatpush1.msra.mxu0 0.0
      %868 = vmatprep.subr.mxu0 0.0
      %869 = vmatpush1.msra.mxu0 0.0
      %870 = vmatprep.subr.mxu0 0.0
      %871 = vmatpush1.msra.mxu0 0.0
      %872 = vmatprep.subr.mxu0 0.0
      %873 = vmatpush1.msra.mxu0 0.0
      %874 = vmatprep.subr.mxu0 0.0
      %875 = vmatpush1.msra.mxu0 0.0
      %876 = vmatprep.subr.mxu0 0.0
      %877 = vmatpush1.msra.mxu0 0.0
      %878 = vmatprep.subr.mxu0 0.0
      %879 = vmatpush1.msra.mxu0 0.0
      %880 = vmatprep.subr.mxu0 0.0
      %881 = vmatpush1.msra.mxu0 0.0
      %882 = vmatprep.subr.mxu0 0.0
      %883 = vmatpush1.msra.mxu0 0.0
      %884 = vmatprep.subr.mxu0 0.0
      %885 = vmatpush1.msra.mxu0 0.0
      %886 = vmatprep.subr.mxu0 0.0
      %887 = vmatpush1.msra.mxu0 0.0
      %888 = vmatprep.subr.mxu0 0.0
      %889 = vmatpush1.msra.mxu0 0.0
      %890 = vmatprep.subr.mxu0 0.0
      %891 = vmatpush1.msra.mxu0 0.0
      %892 = vmatprep.subr.mxu0 0.0
      %893 = vmatpush1.msra.mxu0 0.0
      %894 = vmatprep.subr.mxu0 0.0
      %895 = vmatpush1.msra.mxu0 0.0
      %896 = vmatprep.subr.mxu0 0.0
      %897 = vmatpush1.msra.mxu0 0.0
      %898 = vmatprep.subr.mxu0 0.0
      %899 = vmatpush1.msra.mxu0 0.0
      %900 = vmatprep.subr.mxu0 0.0
      %901 = vmatpush1.msra.mxu0 0.0
      %902 = vmatprep.subr.mxu0 0.0
      %903 = vmatpush1.msra.mxu0 0.0
      %904 = vmatprep.subr.mxu0 0.0
      %905 = vmatpush1.msra.mxu0 0.0
      %906 = vmatprep.subr.mxu0 0.0
      %907 = vmatpush1.msra.mxu0 0.0
      %908 = vmatprep.subr.mxu0 0.0
      %909 = vmatpush1.msra.mxu0 0.0
      %910 = vmatprep.subr.mxu0 0.0
      %911 = vmatpush1.msra.mxu0 0.0
      %912 = vmatprep.subr.mxu0 0.0
      %913 = vmatpush1.msra.mxu0 0.0
      %914 = vmatprep.subr.mxu0 0.0
      %915 = vmatpush1.msra.mxu0 0.0
      %916 = vmatprep.mubr.f32.mxu0 0.0
      %917 = vmatmul.mubr.f32.gmra.mrb[0].mxu0 %v844
      %v918 = vpop.f32.mrb[0].mxu0
      %v919 = vadd.f32 0.0, %v918
      %v920 = vpop.f32.mrb[0].mxu0
      %v921 = vadd.f32 0.0, %v920
      %922 = vdwg.mxu0
      %v923 = vadd.f32 %v828, %v919
      %v924 = vadd.f32 %v829, %v921
      %925 = vrot.lane.b32.xlu0 %v265, 112
      %v926 = vpop.permute.xlu0 %925
      %927 = vrot.lane.b32.xlu0 %v280, 112
      %v928 = vpop.permute.xlu0 %927
      %vm929 = vcmp.lt.s32.totalorder %v267, 112
      %v930 = vsel %vm929, %v926, %v928
      %v931 = vsel %vm929, %v928, %v926
      %v932 = vsel %vm273, %v930, 0.0
      %v933 = vsel %vm274, %v931, 0.0
      %s934 = scalar_lea.vmem %s1, 56
      %v935 = vld [vmem:[%s934] sm:$0xff]
      %v937 = vsel %vm305, %v935, 0
      %v940 = vsel %vm309, %v932, 0
      %v943 = vsel %vm309, %v933, 0
      %945 = vmatprep.subr.mxu0 %v943
      %946 = vmatpush1.msra.mxu0 %v940
      %947 = vmatprep.subr.mxu0 0.0
      %948 = vmatpush1.msra.mxu0 0.0
      %949 = vmatprep.subr.mxu0 0.0
      %950 = vmatpush1.msra.mxu0 0.0
      %951 = vmatprep.subr.mxu0 0.0
      %952 = vmatpush1.msra.mxu0 0.0
      %953 = vmatprep.subr.mxu0 0.0
      %954 = vmatpush1.msra.mxu0 0.0
      %955 = vmatprep.subr.mxu0 0.0
      %956 = vmatpush1.msra.mxu0 0.0
      %957 = vmatprep.subr.mxu0 0.0
      %958 = vmatpush1.msra.mxu0 0.0
      %959 = vmatprep.subr.mxu0 0.0
      %960 = vmatpush1.msra.mxu0 0.0
      %961 = vmatprep.subr.mxu0 0.0
      %962 = vmatpush1.msra.mxu0 0.0
      %963 = vmatprep.subr.mxu0 0.0
      %964 = vmatpush1.msra.mxu0 0.0
      %965 = vmatprep.subr.mxu0 0.0
      %966 = vmatpush1.msra.mxu0 0.0
      %967 = vmatprep.subr.mxu0 0.0
      %968 = vmatpush1.msra.mxu0 0.0
      %969 = vmatprep.subr.mxu0 0.0
      %970 = vmatpush1.msra.mxu0 0.0
      %971 = vmatprep.subr.mxu0 0.0
      %972 = vmatpush1.msra.mxu0 0.0
      %973 = vmatprep.subr.mxu0 0.0
      %974 = vmatpush1.msra.mxu0 0.0
      %975 = vmatprep.subr.mxu0 0.0
      %976 = vmatpush1.msra.mxu0 0.0
      %977 = vmatprep.subr.mxu0 0.0
      %978 = vmatpush1.msra.mxu0 0.0
      %979 = vmatprep.subr.mxu0 0.0
      %980 = vmatpush1.msra.mxu0 0.0
      %981 = vmatprep.subr.mxu0 0.0
      %982 = vmatpush1.msra.mxu0 0.0
      %983 = vmatprep.subr.mxu0 0.0
      %984 = vmatpush1.msra.mxu0 0.0
      %985 = vmatprep.subr.mxu0 0.0
      %986 = vmatpush1.msra.mxu0 0.0
      %987 = vmatprep.subr.mxu0 0.0
      %988 = vmatpush1.msra.mxu0 0.0
      %989 = vmatprep.subr.mxu0 0.0
      %990 = vmatpush1.msra.mxu0 0.0
      %991 = vmatprep.subr.mxu0 0.0
      %992 = vmatpush1.msra.mxu0 0.0
      %993 = vmatprep.subr.mxu0 0.0
      %994 = vmatpush1.msra.mxu0 0.0
      %995 = vmatprep.subr.mxu0 0.0
      %996 = vmatpush1.msra.mxu0 0.0
      %997 = vmatprep.subr.mxu0 0.0
      %998 = vmatpush1.msra.mxu0 0.0
      %999 = vmatprep.subr.mxu0 0.0
      %1000 = vmatpush1.msra.mxu0 0.0
      %1001 = vmatprep.subr.mxu0 0.0
      %1002 = vmatpush1.msra.mxu0 0.0
      %1003 = vmatprep.subr.mxu0 0.0
      %1004 = vmatpush1.msra.mxu0 0.0
      %1005 = vmatprep.subr.mxu0 0.0
      %1006 = vmatpush1.msra.mxu0 0.0
      %1007 = vmatprep.subr.mxu0 0.0
      %1008 = vmatpush1.msra.mxu0 0.0
      %1009 = vmatprep.mubr.f32.mxu0 0.0
      %1010 = vmatmul.mubr.f32.gmra.mrb[0].mxu0 %v937
      %v1011 = vpop.f32.mrb[0].mxu0
      %v1012 = vadd.f32 0.0, %v1011
      %v1013 = vpop.f32.mrb[0].mxu0
      %v1014 = vadd.f32 0.0, %v1013
      %1015 = vdwg.mxu0
      %v1016 = vadd.f32 %v923, %v1012
      %v1017 = vadd.f32 %v924, %v1014
      %1018 = vrot.lane.b32.xlu0 %v265, 111
      %v1019 = vpop.permute.xlu0 %1018
      %1020 = vrot.lane.b32.xlu0 %v280, 111
      %v1021 = vpop.permute.xlu0 %1020
      %vm1022 = vcmp.lt.s32.totalorder %v267, 111
      %v1023 = vsel %vm1022, %v1019, %v1021
      %v1024 = vsel %vm1022, %v1021, %v1019
      %vm1025 = vmand %vm273, %vm277
      %vm1026 = vmand %vm274, %vm278
      %v1027 = vsel %vm1025, %v1023, 0.0
      %v1028 = vsel %vm1026, %v1024, 0.0
      %s1029 = scalar_lea.vmem %s1, 64
      %v1030 = vld [vmem:[%s1029] sm:$0xff]
      %v1032 = vsel %vm305, %v1030, 0
      %v1035 = vsel %vm309, %v1027, 0
      %v1038 = vsel %vm309, %v1028, 0
      %1040 = vmatprep.subr.mxu0 %v1038
      %1041 = vmatpush1.msra.mxu0 %v1035
      %1042 = vmatprep.subr.mxu0 0.0
      %1043 = vmatpush1.msra.mxu0 0.0
      %1044 = vmatprep.subr.mxu0 0.0
      %1045 = vmatpush1.msra.mxu0 0.0
      %1046 = vmatprep.subr.mxu0 0.0
      %1047 = vmatpush1.msra.mxu0 0.0
      %1048 = vmatprep.subr.mxu0 0.0
      %1049 = vmatpush1.msra.mxu0 0.0
      %1050 = vmatprep.subr.mxu0 0.0
      %1051 = vmatpush1.msra.mxu0 0.0
      %1052 = vmatprep.subr.mxu0 0.0
      %1053 = vmatpush1.msra.mxu0 0.0
      %1054 = vmatprep.subr.mxu0 0.0
      %1055 = vmatpush1.msra.mxu0 0.0
      %1056 = vmatprep.subr.mxu0 0.0
      %1057 = vmatpush1.msra.mxu0 0.0
      %1058 = vmatprep.subr.mxu0 0.0
      %1059 = vmatpush1.msra.mxu0 0.0
      %1060 = vmatprep.subr.mxu0 0.0
      %1061 = vmatpush1.msra.mxu0 0.0
      %1062 = vmatprep.subr.mxu0 0.0
      %1063 = vmatpush1.msra.mxu0 0.0
      %1064 = vmatprep.subr.mxu0 0.0
      %1065 = vmatpush1.msra.mxu0 0.0
      %1066 = vmatprep.subr.mxu0 0.0
      %1067 = vmatpush1.msra.mxu0 0.0
      %1068 = vmatprep.subr.mxu0 0.0
      %1069 = vmatpush1.msra.mxu0 0.0
      %1070 = vmatprep.subr.mxu0 0.0
      %1071 = vmatpush1.msra.mxu0 0.0
      %1072 = vmatprep.subr.mxu0 0.0
      %1073 = vmatpush1.msra.mxu0 0.0
      %1074 = vmatprep.subr.mxu0 0.0
      %1075 = vmatpush1.msra.mxu0 0.0
      %1076 = vmatprep.subr.mxu0 0.0
      %1077 = vmatpush1.msra.mxu0 0.0
      %1078 = vmatprep.subr.mxu0 0.0
      %1079 = vmatpush1.msra.mxu0 0.0
      %1080 = vmatprep.subr.mxu0 0.0
      %1081 = vmatpush1.msra.mxu0 0.0
      %1082 = vmatprep.subr.mxu0 0.0
      %1083 = vmatpush1.msra.mxu0 0.0
      %1084 = vmatprep.subr.mxu0 0.0
      %1085 = vmatpush1.msra.mxu0 0.0
      %1086 = vmatprep.subr.mxu0 0.0
      %1087 = vmatpush1.msra.mxu0 0.0
      %1088 = vmatprep.subr.mxu0 0.0
      %1089 = vmatpush1.msra.mxu0 0.0
      %1090 = vmatprep.subr.mxu0 0.0
      %1091 = vmatpush1.msra.mxu0 0.0
      %1092 = vmatprep.subr.mxu0 0.0
      %1093 = vmatpush1.msra.mxu0 0.0
      %1094 = vmatprep.subr.mxu0 0.0
      %1095 = vmatpush1.msra.mxu0 0.0
      %1096 = vmatprep.subr.mxu0 0.0
      %1097 = vmatpush1.msra.mxu0 0.0
      %1098 = vmatprep.subr.mxu0 0.0
      %1099 = vmatpush1.msra.mxu0 0.0
      %1100 = vmatprep.subr.mxu0 0.0
      %1101 = vmatpush1.msra.mxu0 0.0
      %1102 = vmatprep.subr.mxu0 0.0
      %1103 = vmatpush1.msra.mxu0 0.0
      %1104 = vmatprep.mubr.f32.mxu0 0.0
      %1105 = vmatmul.mubr.f32.gmra.mrb[0].mxu0 %v1032
      %v1106 = vpop.f32.mrb[0].mxu0
      %v1107 = vadd.f32 0.0, %v1106
      %v1108 = vpop.f32.mrb[0].mxu0
      %v1109 = vadd.f32 0.0, %v1108
      %1110 = vdwg.mxu0
      %v1111 = vadd.f32 %v1016, %v1107
      %v1112 = vadd.f32 %v1017, %v1109
      %v1113 = vld [vmem:[%s2] sm:$0xff]
      %1115 = vset.pattern.permute.xlu0 0
      %1116 = vperm.xlu0 %1115, %v1113
      %v1117 = vpop.permute.xlu0 %1116
      %v1119 = vadd.f32 %v1111, %v1117
      %v1120 = vadd.f32 %v1112, %v1117
      %1121 = vst [vmem:[%s259] sm:$0xff] %v1119
      %1122 = vst [vmem:[%s259 + $0x8] sm:$0xff] %v1120
      %v1123 = vmax.f32 %v1119, 0.0
      %v1124 = vmax.f32 %v1120, 0.0
      %1125 = vrot.lane.b32.xlu0 %v1123, 17
      %v1126 = vpop.permute.xlu0 %1125
      %1127 = vrot.lane.b32.xlu0 %v1124, 17
      %v1128 = vpop.permute.xlu0 %1127
      %v1129 = vsel %vm286, %v1126, %v1128
      %v1130 = vsel %vm286, %v1128, %v1126
      %v1131 = vsel %vm289, %v1130, 0.0
      %v1132 = vsel %vm290, %v1129, 0.0
      %v1133 = vld [vmem:[%s3] sm:$0xff]
      %v1134 = vld [vmem:[%s3 + $0x8] sm:$0xff]
      %1135 = vrot.lane.b32.xlu0 %v1123, 16
      %v1136 = vpop.permute.xlu0 %1135
      %1137 = vrot.lane.b32.xlu0 %v1124, 16
      %v1138 = vpop.permute.xlu0 %1137
      %v1139 = vsel %vm298, %v1136, %v1138
      %v1140 = vsel %vm298, %v1138, %v1136
      %v1141 = vsel %vm271, %v1140, 0.0
      %v1142 = vsel %vm272, %v1139, 0.0
      %s1143 = scalar_lea.vmem %s3, 16
      %v1144 = vld [vmem:[%s1143] sm:$0xff]
      %v1145 = vld [vmem:[%s1143 + $0x8] sm:$0xff]
      %vm1146 = vcmask 64512
      %v1148 = vsel %vm1146, %v1144, 0
      %v1151 = vsel %vm1146, %v1145, 0
      %1153 = vmatprep.subr.mxu0 %v1142
      %1154 = vmatpush1.msra.mxu0 %v1141
      %1155 = vmatprep.subr.mxu0 0.0
      %1156 = vmatpush1.msra.mxu0 0.0
      %1157 = vmatprep.subr.mxu0 0.0
      %1158 = vmatpush1.msra.mxu0 0.0
      %1159 = vmatprep.subr.mxu0 0.0
      %1160 = vmatpush1.msra.mxu0 0.0
      %1161 = vmatprep.subr.mxu0 0.0
      %1162 = vmatpush1.msra.mxu0 0.0
      %1163 = vmatprep.subr.mxu0 0.0
      %1164 = vmatpush1.msra.mxu0 0.0
      %1165 = vmatprep.subr.mxu0 0.0
      %1166 = vmatpush1.msra.mxu0 0.0
      %1167 = vmatprep.subr.mxu0 0.0
      %1168 = vmatpush1.msra.mxu0 0.0
      %1169 = vmatprep.subr.mxu0 0.0
      %1170 = vmatpush1.msra.mxu0 0.0
      %1171 = vmatprep.subr.mxu0 0.0
      %1172 = vmatpush1.msra.mxu0 0.0
      %1173 = vmatprep.subr.mxu0 0.0
      %1174 = vmatpush1.msra.mxu0 0.0
      %1175 = vmatprep.subr.mxu0 0.0
      %1176 = vmatpush1.msra.mxu0 0.0
      %1177 = vmatprep.subr.mxu0 0.0
      %1178 = vmatpush1.msra.mxu0 0.0
      %1179 = vmatprep.subr.mxu0 0.0
      %1180 = vmatpush1.msra.mxu0 0.0
      %1181 = vmatprep.subr.mxu0 0.0
      %1182 = vmatpush1.msra.mxu0 0.0
      %1183 = vmatprep.subr.mxu0 0.0
      %1184 = vmatpush1.msra.mxu0 0.0
      %1185 = vmatprep.subr.mxu0 0.0
      %1186 = vmatpush1.msra.mxu0 0.0
      %1187 = vmatprep.subr.mxu0 0.0
      %1188 = vmatpush1.msra.mxu0 0.0
      %1189 = vmatprep.subr.mxu0 0.0
      %1190 = vmatpush1.msra.mxu0 0.0
      %1191 = vmatprep.subr.mxu0 0.0
      %1192 = vmatpush1.msra.mxu0 0.0
      %1193 = vmatprep.subr.mxu0 0.0
      %1194 = vmatpush1.msra.mxu0 0.0
      %1195 = vmatprep.subr.mxu0 0.0
      %1196 = vmatpush1.msra.mxu0 0.0
      %1197 = vmatprep.subr.mxu0 0.0
      %1198 = vmatpush1.msra.mxu0 0.0
      %1199 = vmatprep.subr.mxu0 0.0
      %1200 = vmatpush1.msra.mxu0 0.0
      %1201 = vmatprep.subr.mxu0 0.0
      %1202 = vmatpush1.msra.mxu0 0.0
      %1203 = vmatprep.subr.mxu0 0.0
      %1204 = vmatpush1.msra.mxu0 0.0
      %1205 = vmatprep.subr.mxu0 0.0
      %1206 = vmatpush1.msra.mxu0 0.0
      %1207 = vmatprep.subr.mxu0 0.0
      %1208 = vmatpush1.msra.mxu0 0.0
      %1209 = vmatprep.subr.mxu0 0.0
      %1210 = vmatpush1.msra.mxu0 0.0
      %1211 = vmatprep.subr.mxu0 0.0
      %1212 = vmatpush1.msra.mxu0 0.0
      %1213 = vmatprep.subr.mxu0 0.0
      %1214 = vmatpush1.msra.mxu0 0.0
      %1215 = vmatprep.subr.mxu0 0.0
      %1216 = vmatpush1.msra.mxu0 0.0
      %1217 = vmatprep.mubr.f32.mxu0 0.0
      %1218 = vmatmul.mubr.f32.gmra.mrb[0].mxu0 %v1148
      %v1219 = vpop.f32.mrb[0].mxu0
      %v1220 = vadd.f32 0.0, %v1219
      %v1221 = vpop.f32.mrb[0].mxu0
      %v1222 = vadd.f32 0.0, %v1221
      %1223 = vmatprep.mubr.f32.mxu0 0.0
      %1224 = vmatmul.mubr.f32.gmra.mrb[0].mxu0 %v1151
      %v1225 = vpop.f32.mrb[0].mxu0
      %v1226 = vadd.f32 0.0, %v1225
      %v1227 = vpop.f32.mrb[0].mxu0
      %v1228 = vadd.f32 0.0, %v1227
      %1229 = vdwg.mxu0
      %v1231 = vsel %vm1146, %v1133, 0
      %v1234 = vsel %vm1146, %v1134, 0
      %1236 = vmatprep.subr.mxu0 %v1132
      %1237 = vmatpush1.msra.mxu0 %v1131
      %1238 = vmatprep.subr.mxu0 0.0
      %1239 = vmatpush1.msra.mxu0 0.0
      %1240 = vmatprep.subr.mxu0 0.0
      %1241 = vmatpush1.msra.mxu0 0.0
      %1242 = vmatprep.subr.mxu0 0.0
      %1243 = vmatpush1.msra.mxu0 0.0
      %1244 = vmatprep.subr.mxu0 0.0
      %1245 = vmatpush1.msra.mxu0 0.0
      %1246 = vmatprep.subr.mxu0 0.0
      %1247 = vmatpush1.msra.mxu0 0.0
      %1248 = vmatprep.subr.mxu0 0.0
      %1249 = vmatpush1.msra.mxu0 0.0
      %1250 = vmatprep.subr.mxu0 0.0
      %1251 = vmatpush1.msra.mxu0 0.0
      %1252 = vmatprep.subr.mxu0 0.0
      %1253 = vmatpush1.msra.mxu0 0.0
      %1254 = vmatprep.subr.mxu0 0.0
      %1255 = vmatpush1.msra.mxu0 0.0
      %1256 = vmatprep.subr.mxu0 0.0
      %1257 = vmatpush1.msra.mxu0 0.0
      %1258 = vmatprep.subr.mxu0 0.0
      %1259 = vmatpush1.msra.mxu0 0.0
      %1260 = vmatprep.subr.mxu0 0.0
      %1261 = vmatpush1.msra.mxu0 0.0
      %1262 = vmatprep.subr.mxu0 0.0
      %1263 = vmatpush1.msra.mxu0 0.0
      %1264 = vmatprep.subr.mxu0 0.0
      %1265 = vmatpush1.msra.mxu0 0.0
      %1266 = vmatprep.subr.mxu0 0.0
      %1267 = vmatpush1.msra.mxu0 0.0
      %1268 = vmatprep.subr.mxu0 0.0
      %1269 = vmatpush1.msra.mxu0 0.0
      %1270 = vmatprep.subr.mxu0 0.0
      %1271 = vmatpush1.msra.mxu0 0.0
      %1272 = vmatprep.subr.mxu0 0.0
      %1273 = vmatpush1.msra.mxu0 0.0
      %1274 = vmatprep.subr.mxu0 0.0
      %1275 = vmatpush1.msra.mxu0 0.0
      %1276 = vmatprep.subr.mxu0 0.0
      %1277 = vmatpush1.msra.mxu0 0.0
      %1278 = vmatprep.subr.mxu0 0.0
      %1279 = vmatpush1.msra.mxu0 0.0
      %1280 = vmatprep.subr.mxu0 0.0
      %1281 = vmatpush1.msra.mxu0 0.0
      %1282 = vmatprep.subr.mxu0 0.0
      %1283 = vmatpush1.msra.mxu0 0.0
      %1284 = vmatprep.subr.mxu0 0.0
      %1285 = vmatpush1.msra.mxu0 0.0
      %1286 = vmatprep.subr.mxu0 0.0
      %1287 = vmatpush1.msra.mxu0 0.0
      %1288 = vmatprep.subr.mxu0 0.0
      %1289 = vmatpush1.msra.mxu0 0.0
      %1290 = vmatprep.subr.mxu0 0.0
      %1291 = vmatpush1.msra.mxu0 0.0
      %1292 = vmatprep.subr.mxu0 0.0
      %1293 = vmatpush1.msra.mxu0 0.0
      %1294 = vmatprep.subr.mxu0 0.0
      %1295 = vmatpush1.msra.mxu0 0.0
      %1296 = vmatprep.subr.mxu0 0.0
      %1297 = vmatpush1.msra.mxu0 0.0
      %1298 = vmatprep.subr.mxu0 0.0
      %1299 = vmatpush1.msra.mxu0 0.0
      %1300 = vmatprep.mubr.f32.mxu0 0.0
      %1301 = vmatmul.mubr.f32.gmra.mrb[0].mxu0 %v1231
      %v1302 = vpop.f32.mrb[0].mxu0
      %v1303 = vadd.f32 %v1220, %v1302
      %v1304 = vpop.f32.mrb[0].mxu0
      %v1305 = vadd.f32 %v1222, %v1304
      %1306 = vmatprep.mubr.f32.mxu0 0.0
      %1307 = vmatmul.mubr.f32.gmra.mrb[0].mxu0 %v1234
      %v1308 = vpop.f32.mrb[0].mxu0
      %v1309 = vadd.f32 %v1226, %v1308
      %v1310 = vpop.f32.mrb[0].mxu0
      %v1311 = vadd.f32 %v1228, %v1310
      %1312 = vdwg.mxu0
      %1313 = vrot.lane.b32.xlu0 %v1123, 15
      %v1314 = vpop.permute.xlu0 %1313
      %1315 = vrot.lane.b32.xlu0 %v1124, 15
      %v1316 = vpop.permute.xlu0 %1315
      %v1317 = vsel %vm471, %v1314, %v1316
      %v1318 = vsel %vm471, %v1316, %v1314
      %v1319 = vsel %vm474, %v1318, 0.0
      %v1320 = vsel %vm475, %v1317, 0.0
      %s1321 = scalar_lea.vmem %s3, 32
      %v1322 = vld [vmem:[%s1321] sm:$0xff]
      %v1323 = vld [vmem:[%s1321 + $0x8] sm:$0xff]
      %v1325 = vsel %vm1146, %v1322, 0
      %v1328 = vsel %vm1146, %v1323, 0
      %1330 = vmatprep.subr.mxu0 %v1320
      %1331 = vmatpush1.msra.mxu0 %v1319
      %1332 = vmatprep.subr.mxu0 0.0
      %1333 = vmatpush1.msra.mxu0 0.0
      %1334 = vmatprep.subr.mxu0 0.0
      %1335 = vmatpush1.msra.mxu0 0.0
      %1336 = vmatprep.subr.mxu0 0.0
      %1337 = vmatpush1.msra.mxu0 0.0
      %1338 = vmatprep.subr.mxu0 0.0
      %1339 = vmatpush1.msra.mxu0 0.0
      %1340 = vmatprep.subr.mxu0 0.0
      %1341 = vmatpush1.msra.mxu0 0.0
      %1342 = vmatprep.subr.mxu0 0.0
      %1343 = vmatpush1.msra.mxu0 0.0
      %1344 = vmatprep.subr.mxu0 0.0
      %1345 = vmatpush1.msra.mxu0 0.0
      %1346 = vmatprep.subr.mxu0 0.0
      %1347 = vmatpush1.msra.mxu0 0.0
      %1348 = vmatprep.subr.mxu0 0.0
      %1349 = vmatpush1.msra.mxu0 0.0
      %1350 = vmatprep.subr.mxu0 0.0
      %1351 = vmatpush1.msra.mxu0 0.0
      %1352 = vmatprep.subr.mxu0 0.0
      %1353 = vmatpush1.msra.mxu0 0.0
      %1354 = vmatprep.subr.mxu0 0.0
      %1355 = vmatpush1.msra.mxu0 0.0
      %1356 = vmatprep.subr.mxu0 0.0
      %1357 = vmatpush1.msra.mxu0 0.0
      %1358 = vmatprep.subr.mxu0 0.0
      %1359 = vmatpush1.msra.mxu0 0.0
      %1360 = vmatprep.subr.mxu0 0.0
      %1361 = vmatpush1.msra.mxu0 0.0
      %1362 = vmatprep.subr.mxu0 0.0
      %1363 = vmatpush1.msra.mxu0 0.0
      %1364 = vmatprep.subr.mxu0 0.0
      %1365 = vmatpush1.msra.mxu0 0.0
      %1366 = vmatprep.subr.mxu0 0.0
      %1367 = vmatpush1.msra.mxu0 0.0
      %1368 = vmatprep.subr.mxu0 0.0
      %1369 = vmatpush1.msra.mxu0 0.0
      %1370 = vmatprep.subr.mxu0 0.0
      %1371 = vmatpush1.msra.mxu0 0.0
      %1372 = vmatprep.subr.mxu0 0.0
      %1373 = vmatpush1.msra.mxu0 0.0
      %1374 = vmatprep.subr.mxu0 0.0
      %1375 = vmatpush1.msra.mxu0 0.0
      %1376 = vmatprep.subr.mxu0 0.0
      %1377 = vmatpush1.msra.mxu0 0.0
      %1378 = vmatprep.subr.mxu0 0.0
      %1379 = vmatpush1.msra.mxu0 0.0
      %1380 = vmatprep.subr.mxu0 0.0
      %1381 = vmatpush1.msra.mxu0 0.0
      %1382 = vmatprep.subr.mxu0 0.0
      %1383 = vmatpush1.msra.mxu0 0.0
      %1384 = vmatprep.subr.mxu0 0.0
      %1385 = vmatpush1.msra.mxu0 0.0
      %1386 = vmatprep.subr.mxu0 0.0
      %1387 = vmatpush1.msra.mxu0 0.0
      %1388 = vmatprep.subr.mxu0 0.0
      %1389 = vmatpush1.msra.mxu0 0.0
      %1390 = vmatprep.subr.mxu0 0.0
      %1391 = vmatpush1.msra.mxu0 0.0
      %1392 = vmatprep.subr.mxu0 0.0
      %1393 = vmatpush1.msra.mxu0 0.0
      %1394 = vmatprep.mubr.f32.mxu0 0.0
      %1395 = vmatmul.mubr.f32.gmra.mrb[0].mxu0 %v1325
      %v1396 = vpop.f32.mrb[0].mxu0
      %v1397 = vadd.f32 0.0, %v1396
      %v1398 = vpop.f32.mrb[0].mxu0
      %v1399 = vadd.f32 0.0, %v1398
      %1400 = vmatprep.mubr.f32.mxu0 0.0
      %1401 = vmatmul.mubr.f32.gmra.mrb[0].mxu0 %v1328
      %v1402 = vpop.f32.mrb[0].mxu0
      %v1403 = vadd.f32 0.0, %v1402
      %v1404 = vpop.f32.mrb[0].mxu0
      %v1405 = vadd.f32 0.0, %v1404
      %1406 = vdwg.mxu0
      %v1407 = vadd.f32 %v1303, %v1397
      %v1408 = vadd.f32 %v1305, %v1399
      %v1409 = vadd.f32 %v1309, %v1403
      %v1410 = vadd.f32 %v1311, %v1405
      %1411 = vrot.lane.b32.xlu0 %v1123, 1
      %v1412 = vpop.permute.xlu0 %1411
      %1413 = vrot.lane.b32.xlu0 %v1124, 1
      %v1414 = vpop.permute.xlu0 %1413
      %v1415 = vsel %vm566, %v1412, %v1414
      %v1416 = vsel %vm566, %v1414, %v1412
      %v1417 = vsel %vm275, %v1416, 0.0
      %v1418 = vsel %vm276, %v1415, 0.0
      %s1419 = scalar_lea.vmem %s3, 48
      %v1420 = vld [vmem:[%s1419] sm:$0xff]
      %v1421 = vld [vmem:[%s1419 + $0x8] sm:$0xff]
      %v1423 = vsel %vm1146, %v1420, 0
      %v1426 = vsel %vm1146, %v1421, 0
      %1428 = vmatprep.subr.mxu0 %v1418
      %1429 = vmatpush1.msra.mxu0 %v1417
      %1430 = vmatprep.subr.mxu0 0.0
      %1431 = vmatpush1.msra.mxu0 0.0
      %1432 = vmatprep.subr.mxu0 0.0
      %1433 = vmatpush1.msra.mxu0 0.0
      %1434 = vmatprep.subr.mxu0 0.0
      %1435 = vmatpush1.msra.mxu0 0.0
      %1436 = vmatprep.subr.mxu0 0.0
      %1437 = vmatpush1.msra.mxu0 0.0
      %1438 = vmatprep.subr.mxu0 0.0
      %1439 = vmatpush1.msra.mxu0 0.0
      %1440 = vmatprep.subr.mxu0 0.0
      %1441 = vmatpush1.msra.mxu0 0.0
      %1442 = vmatprep.subr.mxu0 0.0
      %1443 = vmatpush1.msra.mxu0 0.0
      %1444 = vmatprep.subr.mxu0 0.0
      %1445 = vmatpush1.msra.mxu0 0.0
      %1446 = vmatprep.subr.mxu0 0.0
      %1447 = vmatpush1.msra.mxu0 0.0
      %1448 = vmatprep.subr.mxu0 0.0
      %1449 = vmatpush1.msra.mxu0 0.0
      %1450 = vmatprep.subr.mxu0 0.0
      %1451 = vmatpush1.msra.mxu0 0.0
      %1452 = vmatprep.subr.mxu0 0.0
      %1453 = vmatpush1.msra.mxu0 0.0
      %1454 = vmatprep.subr.mxu0 0.0
      %1455 = vmatpush1.msra.mxu0 0.0
      %1456 = vmatprep.subr.mxu0 0.0
      %1457 = vmatpush1.msra.mxu0 0.0
      %1458 = vmatprep.subr.mxu0 0.0
      %1459 = vmatpush1.msra.mxu0 0.0
      %1460 = vmatprep.subr.mxu0 0.0
      %1461 = vmatpush1.msra.mxu0 0.0
      %1462 = vmatprep.subr.mxu0 0.0
      %1463 = vmatpush1.msra.mxu0 0.0
      %1464 = vmatprep.subr.mxu0 0.0
      %1465 = vmatpush1.msra.mxu0 0.0
      %1466 = vmatprep.subr.mxu0 0.0
      %1467 = vmatpush1.msra.mxu0 0.0
      %1468 = vmatprep.subr.mxu0 0.0
      %1469 = vmatpush1.msra.mxu0 0.0
      %1470 = vmatprep.subr.mxu0 0.0
      %1471 = vmatpush1.msra.mxu0 0.0
      %1472 = vmatprep.subr.mxu0 0.0
      %1473 = vmatpush1.msra.mxu0 0.0
      %1474 = vmatprep.subr.mxu0 0.0
      %1475 = vmatpush1.msra.mxu0 0.0
      %1476 = vmatprep.subr.mxu0 0.0
      %1477 = vmatpush1.msra.mxu0 0.0
      %1478 = vmatprep.subr.mxu0 0.0
      %1479 = vmatpush1.msra.mxu0 0.0
      %1480 = vmatprep.subr.mxu0 0.0
      %1481 = vmatpush1.msra.mxu0 0.0
      %1482 = vmatprep.subr.mxu0 0.0
      %1483 = vmatpush1.msra.mxu0 0.0
      %1484 = vmatprep.subr.mxu0 0.0
      %1485 = vmatpush1.msra.mxu0 0.0
      %1486 = vmatprep.subr.mxu0 0.0
      %1487 = vmatpush1.msra.mxu0 0.0
      %1488 = vmatprep.subr.mxu0 0.0
      %1489 = vmatpush1.msra.mxu0 0.0
      %1490 = vmatprep.subr.mxu0 0.0
      %1491 = vmatpush1.msra.mxu0 0.0
      %1492 = vmatprep.mubr.f32.mxu0 0.0
      %1493 = vmatmul.mubr.f32.gmra.mrb[0].mxu0 %v1423
      %v1494 = vpop.f32.mrb[0].mxu0
      %v1495 = vadd.f32 0.0, %v1494
      %v1496 = vpop.f32.mrb[0].mxu0
      %v1497 = vadd.f32 0.0, %v1496
      %1498 = vmatprep.mubr.f32.mxu0 0.0
      %1499 = vmatmul.mubr.f32.gmra.mrb[0].mxu0 %v1426
      %v1500 = vpop.f32.mrb[0].mxu0
      %v1501 = vadd.f32 0.0, %v1500
      %v1502 = vpop.f32.mrb[0].mxu0
      %v1503 = vadd.f32 0.0, %v1502
      %1504 = vdwg.mxu0
      %v1505 = vadd.f32 %v1407, %v1495
      %v1506 = vadd.f32 %v1408, %v1497
      %v1507 = vadd.f32 %v1409, %v1501
      %v1508 = vadd.f32 %v1410, %v1503
      %s1509 = scalar_lea.vmem %s3, 64
      %v1510 = vld [vmem:[%s1509] sm:$0xff]
      %v1511 = vld [vmem:[%s1509 + $0x8] sm:$0xff]
      %v1513 = vsel %vm1146, %v1510, 0
      %v1516 = vsel %vm1146, %v1511, 0
      %1518 = vmatprep.subr.mxu0 %v1124
      %1519 = vmatpush1.msra.mxu0 %v1123
      %1520 = vmatprep.subr.mxu0 0.0
      %1521 = vmatpush1.msra.mxu0 0.0
      %1522 = vmatprep.subr.mxu0 0.0
      %1523 = vmatpush1.msra.mxu0 0.0
      %1524 = vmatprep.subr.mxu0 0.0
      %1525 = vmatpush1.msra.mxu0 0.0
      %1526 = vmatprep.subr.mxu0 0.0
      %1527 = vmatpush1.msra.mxu0 0.0
      %1528 = vmatprep.subr.mxu0 0.0
      %1529 = vmatpush1.msra.mxu0 0.0
      %1530 = vmatprep.subr.mxu0 0.0
      %1531 = vmatpush1.msra.mxu0 0.0
      %1532 = vmatprep.subr.mxu0 0.0
      %1533 = vmatpush1.msra.mxu0 0.0
      %1534 = vmatprep.subr.mxu0 0.0
      %1535 = vmatpush1.msra.mxu0 0.0
      %1536 = vmatprep.subr.mxu0 0.0
      %1537 = vmatpush1.msra.mxu0 0.0
      %1538 = vmatprep.subr.mxu0 0.0
      %1539 = vmatpush1.msra.mxu0 0.0
      %1540 = vmatprep.subr.mxu0 0.0
      %1541 = vmatpush1.msra.mxu0 0.0
      %1542 = vmatprep.subr.mxu0 0.0
      %1543 = vmatpush1.msra.mxu0 0.0
      %1544 = vmatprep.subr.mxu0 0.0
      %1545 = vmatpush1.msra.mxu0 0.0
      %1546 = vmatprep.subr.mxu0 0.0
      %1547 = vmatpush1.msra.mxu0 0.0
      %1548 = vmatprep.subr.mxu0 0.0
      %1549 = vmatpush1.msra.mxu0 0.0
      %1550 = vmatprep.subr.mxu0 0.0
      %1551 = vmatpush1.msra.mxu0 0.0
      %1552 = vmatprep.subr.mxu0 0.0
      %1553 = vmatpush1.msra.mxu0 0.0
      %1554 = vmatprep.subr.mxu0 0.0
      %1555 = vmatpush1.msra.mxu0 0.0
      %1556 = vmatprep.subr.mxu0 0.0
      %1557 = vmatpush1.msra.mxu0 0.0
      %1558 = vmatprep.subr.mxu0 0.0
      %1559 = vmatpush1.msra.mxu0 0.0
      %1560 = vmatprep.subr.mxu0 0.0
      %1561 = vmatpush1.msra.mxu0 0.0
      %1562 = vmatprep.subr.mxu0 0.0
      %1563 = vmatpush1.msra.mxu0 0.0
      %1564 = vmatprep.subr.mxu0 0.0
      %1565 = vmatpush1.msra.mxu0 0.0
      %1566 = vmatprep.subr.mxu0 0.0
      %1567 = vmatpush1.msra.mxu0 0.0
      %1568 = vmatprep.subr.mxu0 0.0
      %1569 = vmatpush1.msra.mxu0 0.0
      %1570 = vmatprep.subr.mxu0 0.0
      %1571 = vmatpush1.msra.mxu0 0.0
      %1572 = vmatprep.subr.mxu0 0.0
      %1573 = vmatpush1.msra.mxu0 0.0
      %1574 = vmatprep.subr.mxu0 0.0
      %1575 = vmatpush1.msra.mxu0 0.0
      %1576 = vmatprep.subr.mxu0 0.0
      %1577 = vmatpush1.msra.mxu0 0.0
      %1578 = vmatprep.subr.mxu0 0.0
      %1579 = vmatpush1.msra.mxu0 0.0
      %1580 = vmatprep.subr.mxu0 0.0
      %1581 = vmatpush1.msra.mxu0 0.0
      %1582 = vmatprep.mubr.f32.mxu0 0.0
      %1583 = vmatmul.mubr.f32.gmra.mrb[0].mxu0 %v1513
      %v1584 = vpop.f32.mrb[0].mxu0
      %v1585 = vadd.f32 0.0, %v1584
      %v1586 = vpop.f32.mrb[0].mxu0
      %v1587 = vadd.f32 0.0, %v1586
      %1588 = vmatprep.mubr.f32.mxu0 0.0
      %1589 = vmatmul.mubr.f32.gmra.mrb[0].mxu0 %v1516
      %v1590 = vpop.f32.mrb[0].mxu0
      %v1591 = vadd.f32 0.0, %v1590
      %v1592 = vpop.f32.mrb[0].mxu0
      %v1593 = vadd.f32 0.0, %v1592
      %1594 = vdwg.mxu0
      %v1595 = vadd.f32 %v1505, %v1585
      %v1596 = vadd.f32 %v1506, %v1587
      %v1597 = vadd.f32 %v1507, %v1591
      %v1598 = vadd.f32 %v1508, %v1593
      %1599 = vrot.lane.b32.xlu0 %v1123, 127
      %v1600 = vpop.permute.xlu0 %1599
      %1601 = vrot.lane.b32.xlu0 %v1124, 127
      %v1602 = vpop.permute.xlu0 %1601
      %v1603 = vsel %vm741, %v1600, %v1602
      %v1604 = vsel %vm741, %v1602, %v1600
      %v1605 = vsel %vm277, %v1603, 0.0
      %v1606 = vsel %vm278, %v1604, 0.0
      %s1607 = scalar_lea.vmem %s3, 80
      %v1608 = vld [vmem:[%s1607] sm:$0xff]
      %v1609 = vld [vmem:[%s1607 + $0x8] sm:$0xff]
      %v1611 = vsel %vm1146, %v1608, 0
      %v1614 = vsel %vm1146, %v1609, 0
      %1616 = vmatprep.subr.mxu0 %v1606
      %1617 = vmatpush1.msra.mxu0 %v1605
      %1618 = vmatprep.subr.mxu0 0.0
      %1619 = vmatpush1.msra.mxu0 0.0
      %1620 = vmatprep.subr.mxu0 0.0
      %1621 = vmatpush1.msra.mxu0 0.0
      %1622 = vmatprep.subr.mxu0 0.0
      %1623 = vmatpush1.msra.mxu0 0.0
      %1624 = vmatprep.subr.mxu0 0.0
      %1625 = vmatpush1.msra.mxu0 0.0
      %1626 = vmatprep.subr.mxu0 0.0
      %1627 = vmatpush1.msra.mxu0 0.0
      %1628 = vmatprep.subr.mxu0 0.0
      %1629 = vmatpush1.msra.mxu0 0.0
      %1630 = vmatprep.subr.mxu0 0.0
      %1631 = vmatpush1.msra.mxu0 0.0
      %1632 = vmatprep.subr.mxu0 0.0
      %1633 = vmatpush1.msra.mxu0 0.0
      %1634 = vmatprep.subr.mxu0 0.0
      %1635 = vmatpush1.msra.mxu0 0.0
      %1636 = vmatprep.subr.mxu0 0.0
      %1637 = vmatpush1.msra.mxu0 0.0
      %1638 = vmatprep.subr.mxu0 0.0
      %1639 = vmatpush1.msra.mxu0 0.0
      %1640 = vmatprep.subr.mxu0 0.0
      %1641 = vmatpush1.msra.mxu0 0.0
      %1642 = vmatprep.subr.mxu0 0.0
      %1643 = vmatpush1.msra.mxu0 0.0
      %1644 = vmatprep.subr.mxu0 0.0
      %1645 = vmatpush1.msra.mxu0 0.0
      %1646 = vmatprep.subr.mxu0 0.0
      %1647 = vmatpush1.msra.mxu0 0.0
      %1648 = vmatprep.subr.mxu0 0.0
      %1649 = vmatpush1.msra.mxu0 0.0
      %1650 = vmatprep.subr.mxu0 0.0
      %1651 = vmatpush1.msra.mxu0 0.0
      %1652 = vmatprep.subr.mxu0 0.0
      %1653 = vmatpush1.msra.mxu0 0.0
      %1654 = vmatprep.subr.mxu0 0.0
      %1655 = vmatpush1.msra.mxu0 0.0
      %1656 = vmatprep.subr.mxu0 0.0
      %1657 = vmatpush1.msra.mxu0 0.0
      %1658 = vmatprep.subr.mxu0 0.0
      %1659 = vmatpush1.msra.mxu0 0.0
      %1660 = vmatprep.subr.mxu0 0.0
      %1661 = vmatpush1.msra.mxu0 0.0
      %1662 = vmatprep.subr.mxu0 0.0
      %1663 = vmatpush1.msra.mxu0 0.0
      %1664 = vmatprep.subr.mxu0 0.0
      %1665 = vmatpush1.msra.mxu0 0.0
      %1666 = vmatprep.subr.mxu0 0.0
      %1667 = vmatpush1.msra.mxu0 0.0
      %1668 = vmatprep.subr.mxu0 0.0
      %1669 = vmatpush1.msra.mxu0 0.0
      %1670 = vmatprep.subr.mxu0 0.0
      %1671 = vmatpush1.msra.mxu0 0.0
      %1672 = vmatprep.subr.mxu0 0.0
      %1673 = vmatpush1.msra.mxu0 0.0
      %1674 = vmatprep.subr.mxu0 0.0
      %1675 = vmatpush1.msra.mxu0 0.0
      %1676 = vmatprep.subr.mxu0 0.0
      %1677 = vmatpush1.msra.mxu0 0.0
      %1678 = vmatprep.subr.mxu0 0.0
      %1679 = vmatpush1.msra.mxu0 0.0
      %1680 = vmatprep.mubr.f32.mxu0 0.0
      %1681 = vmatmul.mubr.f32.gmra.mrb[0].mxu0 %v1611
      %v1682 = vpop.f32.mrb[0].mxu0
      %v1683 = vadd.f32 0.0, %v1682
      %v1684 = vpop.f32.mrb[0].mxu0
      %v1685 = vadd.f32 0.0, %v1684
      %1686 = vmatprep.mubr.f32.mxu0 0.0
      %1687 = vmatmul.mubr.f32.gmra.mrb[0].mxu0 %v1614
      %v1688 = vpop.f32.mrb[0].mxu0
      %v1689 = vadd.f32 0.0, %v1688
      %v1690 = vpop.f32.mrb[0].mxu0
      %v1691 = vadd.f32 0.0, %v1690
      %1692 = vdwg.mxu0
      %v1693 = vadd.f32 %v1595, %v1683
      %v1694 = vadd.f32 %v1596, %v1685
      %v1695 = vadd.f32 %v1597, %v1689
      %v1696 = vadd.f32 %v1598, %v1691
      %1697 = vrot.lane.b32.xlu0 %v1123, 113
      %v1698 = vpop.permute.xlu0 %1697
      %1699 = vrot.lane.b32.xlu0 %v1124, 113
      %v1700 = vpop.permute.xlu0 %1699
      %v1701 = vsel %vm834, %v1698, %v1700
      %v1702 = vsel %vm834, %v1700, %v1698
      %v1703 = vsel %vm837, %v1701, 0.0
      %v1704 = vsel %vm838, %v1702, 0.0
      %s1705 = scalar_lea.vmem %s3, 96
      %v1706 = vld [vmem:[%s1705] sm:$0xff]
      %v1707 = vld [vmem:[%s1705 + $0x8] sm:$0xff]
      %v1709 = vsel %vm1146, %v1706, 0
      %v1712 = vsel %vm1146, %v1707, 0
      %1714 = vmatprep.subr.mxu0 %v1704
      %1715 = vmatpush1.msra.mxu0 %v1703
      %1716 = vmatprep.subr.mxu0 0.0
      %1717 = vmatpush1.msra.mxu0 0.0
      %1718 = vmatprep.subr.mxu0 0.0
      %1719 = vmatpush1.msra.mxu0 0.0
      %1720 = vmatprep.subr.mxu0 0.0
      %1721 = vmatpush1.msra.mxu0 0.0
      %1722 = vmatprep.subr.mxu0 0.0
      %1723 = vmatpush1.msra.mxu0 0.0
      %1724 = vmatprep.subr.mxu0 0.0
      %1725 = vmatpush1.msra.mxu0 0.0
      %1726 = vmatprep.subr.mxu0 0.0
      %1727 = vmatpush1.msra.mxu0 0.0
      %1728 = vmatprep.subr.mxu0 0.0
      %1729 = vmatpush1.msra.mxu0 0.0
      %1730 = vmatprep.subr.mxu0 0.0
      %1731 = vmatpush1.msra.mxu0 0.0
      %1732 = vmatprep.subr.mxu0 0.0
      %1733 = vmatpush1.msra.mxu0 0.0
      %1734 = vmatprep.subr.mxu0 0.0
      %1735 = vmatpush1.msra.mxu0 0.0
      %1736 = vmatprep.subr.mxu0 0.0
      %1737 = vmatpush1.msra.mxu0 0.0
      %1738 = vmatprep.subr.mxu0 0.0
      %1739 = vmatpush1.msra.mxu0 0.0
      %1740 = vmatprep.subr.mxu0 0.0
      %1741 = vmatpush1.msra.mxu0 0.0
      %1742 = vmatprep.subr.mxu0 0.0
      %1743 = vmatpush1.msra.mxu0 0.0
      %1744 = vmatprep.subr.mxu0 0.0
      %1745 = vmatpush1.msra.mxu0 0.0
      %1746 = vmatprep.subr.mxu0 0.0
      %1747 = vmatpush1.msra.mxu0 0.0
      %1748 = vmatprep.subr.mxu0 0.0
      %1749 = vmatpush1.msra.mxu0 0.0
      %1750 = vmatprep.subr.mxu0 0.0
      %1751 = vmatpush1.msra.mxu0 0.0
      %1752 = vmatprep.subr.mxu0 0.0
      %1753 = vmatpush1.msra.mxu0 0.0
      %1754 = vmatprep.subr.mxu0 0.0
      %1755 = vmatpush1.msra.mxu0 0.0
      %1756 = vmatprep.subr.mxu0 0.0
      %1757 = vmatpush1.msra.mxu0 0.0
      %1758 = vmatprep.subr.mxu0 0.0
      %1759 = vmatpush1.msra.mxu0 0.0
      %1760 = vmatprep.subr.mxu0 0.0
      %1761 = vmatpush1.msra.mxu0 0.0
      %1762 = vmatprep.subr.mxu0 0.0
      %1763 = vmatpush1.msra.mxu0 0.0
      %1764 = vmatprep.subr.mxu0 0.0
      %1765 = vmatpush1.msra.mxu0 0.0
      %1766 = vmatprep.subr.mxu0 0.0
      %1767 = vmatpush1.msra.mxu0 0.0
      %1768 = vmatprep.subr.mxu0 0.0
      %1769 = vmatpush1.msra.mxu0 0.0
      %1770 = vmatprep.subr.mxu0 0.0
      %1771 = vmatpush1.msra.mxu0 0.0
      %1772 = vmatprep.subr.mxu0 0.0
      %1773 = vmatpush1.msra.mxu0 0.0
      %1774 = vmatprep.subr.mxu0 0.0
      %1775 = vmatpush1.msra.mxu0 0.0
      %1776 = vmatprep.subr.mxu0 0.0
      %1777 = vmatpush1.msra.mxu0 0.0
      %1778 = vmatprep.mubr.f32.mxu0 0.0
      %1779 = vmatmul.mubr.f32.gmra.mrb[0].mxu0 %v1709
      %v1780 = vpop.f32.mrb[0].mxu0
      %v1781 = vadd.f32 0.0, %v1780
      %v1782 = vpop.f32.mrb[0].mxu0
      %v1783 = vadd.f32 0.0, %v1782
      %1784 = vmatprep.mubr.f32.mxu0 0.0
      %1785 = vmatmul.mubr.f32.gmra.mrb[0].mxu0 %v1712
      %v1786 = vpop.f32.mrb[0].mxu0
      %v1787 = vadd.f32 0.0, %v1786
      %v1788 = vpop.f32.mrb[0].mxu0
      %v1789 = vadd.f32 0.0, %v1788
      %1790 = vdwg.mxu0
      %v1791 = vadd.f32 %v1693, %v1781
      %v1792 = vadd.f32 %v1694, %v1783
      %v1793 = vadd.f32 %v1695, %v1787
      %v1794 = vadd.f32 %v1696, %v1789
      %1795 = vrot.lane.b32.xlu0 %v1123, 112
      %v1796 = vpop.permute.xlu0 %1795
      %1797 = vrot.lane.b32.xlu0 %v1124, 112
      %v1798 = vpop.permute.xlu0 %1797
      %v1799 = vsel %vm929, %v1796, %v1798
      %v1800 = vsel %vm929, %v1798, %v1796
      %v1801 = vsel %vm273, %v1799, 0.0
      %v1802 = vsel %vm274, %v1800, 0.0
      %s1803 = scalar_lea.vmem %s3, 112
      %v1804 = vld [vmem:[%s1803] sm:$0xff]
      %v1805 = vld [vmem:[%s1803 + $0x8] sm:$0xff]
      %v1807 = vsel %vm1146, %v1804, 0
      %v1810 = vsel %vm1146, %v1805, 0
      %1812 = vmatprep.subr.mxu0 %v1802
      %1813 = vmatpush1.msra.mxu0 %v1801
      %1814 = vmatprep.subr.mxu0 0.0
      %1815 = vmatpush1.msra.mxu0 0.0
      %1816 = vmatprep.subr.mxu0 0.0
      %1817 = vmatpush1.msra.mxu0 0.0
      %1818 = vmatprep.subr.mxu0 0.0
      %1819 = vmatpush1.msra.mxu0 0.0
      %1820 = vmatprep.subr.mxu0 0.0
      %1821 = vmatpush1.msra.mxu0 0.0
      %1822 = vmatprep.subr.mxu0 0.0
      %1823 = vmatpush1.msra.mxu0 0.0
      %1824 = vmatprep.subr.mxu0 0.0
      %1825 = vmatpush1.msra.mxu0 0.0
      %1826 = vmatprep.subr.mxu0 0.0
      %1827 = vmatpush1.msra.mxu0 0.0
      %1828 = vmatprep.subr.mxu0 0.0
      %1829 = vmatpush1.msra.mxu0 0.0
      %1830 = vmatprep.subr.mxu0 0.0
      %1831 = vmatpush1.msra.mxu0 0.0
      %1832 = vmatprep.subr.mxu0 0.0
      %1833 = vmatpush1.msra.mxu0 0.0
      %1834 = vmatprep.subr.mxu0 0.0
      %1835 = vmatpush1.msra.mxu0 0.0
      %1836 = vmatprep.subr.mxu0 0.0
      %1837 = vmatpush1.msra.mxu0 0.0
      %1838 = vmatprep.subr.mxu0 0.0
      %1839 = vmatpush1.msra.mxu0 0.0
      %1840 = vmatprep.subr.mxu0 0.0
      %1841 = vmatpush1.msra.mxu0 0.0
      %1842 = vmatprep.subr.mxu0 0.0
      %1843 = vmatpush1.msra.mxu0 0.0
      %1844 = vmatprep.subr.mxu0 0.0
      %1845 = vmatpush1.msra.mxu0 0.0
      %1846 = vmatprep.subr.mxu0 0.0
      %1847 = vmatpush1.msra.mxu0 0.0
      %1848 = vmatprep.subr.mxu0 0.0
      %1849 = vmatpush1.msra.mxu0 0.0
      %1850 = vmatprep.subr.mxu0 0.0
      %1851 = vmatpush1.msra.mxu0 0.0
      %1852 = vmatprep.subr.mxu0 0.0
      %1853 = vmatpush1.msra.mxu0 0.0
      %1854 = vmatprep.subr.mxu0 0.0
      %1855 = vmatpush1.msra.mxu0 0.0
      %1856 = vmatprep.subr.mxu0 0.0
      %1857 = vmatpush1.msra.mxu0 0.0
      %1858 = vmatprep.subr.mxu0 0.0
      %1859 = vmatpush1.msra.mxu0 0.0
      %1860 = vmatprep.subr.mxu0 0.0
      %1861 = vmatpush1.msra.mxu0 0.0
      %1862 = vmatprep.subr.mxu0 0.0
      %1863 = vmatpush1.msra.mxu0 0.0
      %1864 = vmatprep.subr.mxu0 0.0
      %1865 = vmatpush1.msra.mxu0 0.0
      %1866 = vmatprep.subr.mxu0 0.0
      %1867 = vmatpush1.msra.mxu0 0.0
      %1868 = vmatprep.subr.mxu0 0.0
      %1869 = vmatpush1.msra.mxu0 0.0
      %1870 = vmatprep.subr.mxu0 0.0
      %1871 = vmatpush1.msra.mxu0 0.0
      %1872 = vmatprep.subr.mxu0 0.0
      %1873 = vmatpush1.msra.mxu0 0.0
      %1874 = vmatprep.subr.mxu0 0.0
      %1875 = vmatpush1.msra.mxu0 0.0
      %1876 = vmatprep.mubr.f32.mxu0 0.0
      %1877 = vmatmul.mubr.f32.gmra.mrb[0].mxu0 %v1807
      %v1878 = vpop.f32.mrb[0].mxu0
      %v1879 = vadd.f32 0.0, %v1878
      %v1880 = vpop.f32.mrb[0].mxu0
      %v1881 = vadd.f32 0.0, %v1880
      %1882 = vmatprep.mubr.f32.mxu0 0.0
      %1883 = vmatmul.mubr.f32.gmra.mrb[0].mxu0 %v1810
      %v1884 = vpop.f32.mrb[0].mxu0
      %v1885 = vadd.f32 0.0, %v1884
      %v1886 = vpop.f32.mrb[0].mxu0
      %v1887 = vadd.f32 0.0, %v1886
      %1888 = vdwg.mxu0
      %v1889 = vadd.f32 %v1791, %v1879
      %v1890 = vadd.f32 %v1792, %v1881
      %v1891 = vadd.f32 %v1793, %v1885
      %v1892 = vadd.f32 %v1794, %v1887
      %1893 = vrot.lane.b32.xlu0 %v1123, 111
      %v1894 = vpop.permute.xlu0 %1893
      %1895 = vrot.lane.b32.xlu0 %v1124, 111
      %v1896 = vpop.permute.xlu0 %1895
      %v1897 = vsel %vm1022, %v1894, %v1896
      %v1898 = vsel %vm1022, %v1896, %v1894
      %v1899 = vsel %vm1025, %v1897, 0.0
      %v1900 = vsel %vm1026, %v1898, 0.0
      %s1901 = scalar_lea.vmem %s3, 128
      %v1902 = vld [vmem:[%s1901] sm:$0xff]
      %v1903 = vld [vmem:[%s1901 + $0x8] sm:$0xff]
      %v1905 = vsel %vm1146, %v1902, 0
      %v1908 = vsel %vm1146, %v1903, 0
      %1910 = vmatprep.subr.mxu0 %v1900
      %1911 = vmatpush1.msra.mxu0 %v1899
      %1912 = vmatprep.subr.mxu0 0.0
      %1913 = vmatpush1.msra.mxu0 0.0
      %1914 = vmatprep.subr.mxu0 0.0
      %1915 = vmatpush1.msra.mxu0 0.0
      %1916 = vmatprep.subr.mxu0 0.0
      %1917 = vmatpush1.msra.mxu0 0.0
      %1918 = vmatprep.subr.mxu0 0.0
      %1919 = vmatpush1.msra.mxu0 0.0
      %1920 = vmatprep.subr.mxu0 0.0
      %1921 = vmatpush1.msra.mxu0 0.0
      %1922 = vmatprep.subr.mxu0 0.0
      %1923 = vmatpush1.msra.mxu0 0.0
      %1924 = vmatprep.subr.mxu0 0.0
      %1925 = vmatpush1.msra.mxu0 0.0
      %1926 = vmatprep.subr.mxu0 0.0
      %1927 = vmatpush1.msra.mxu0 0.0
      %1928 = vmatprep.subr.mxu0 0.0
      %1929 = vmatpush1.msra.mxu0 0.0
      %1930 = vmatprep.subr.mxu0 0.0
      %1931 = vmatpush1.msra.mxu0 0.0
      %1932 = vmatprep.subr.mxu0 0.0
      %1933 = vmatpush1.msra.mxu0 0.0
      %1934 = vmatprep.subr.mxu0 0.0
      %1935 = vmatpush1.msra.mxu0 0.0
      %1936 = vmatprep.subr.mxu0 0.0
      %1937 = vmatpush1.msra.mxu0 0.0
      %1938 = vmatprep.subr.mxu0 0.0
      %1939 = vmatpush1.msra.mxu0 0.0
      %1940 = vmatprep.subr.mxu0 0.0
      %1941 = vmatpush1.msra.mxu0 0.0
      %1942 = vmatprep.subr.mxu0 0.0
      %1943 = vmatpush1.msra.mxu0 0.0
      %1944 = vmatprep.subr.mxu0 0.0
      %1945 = vmatpush1.msra.mxu0 0.0
      %1946 = vmatprep.subr.mxu0 0.0
      %1947 = vmatpush1.msra.mxu0 0.0
      %1948 = vmatprep.subr.mxu0 0.0
      %1949 = vmatpush1.msra.mxu0 0.0
      %1950 = vmatprep.subr.mxu0 0.0
      %1951 = vmatpush1.msra.mxu0 0.0
      %1952 = vmatprep.subr.mxu0 0.0
      %1953 = vmatpush1.msra.mxu0 0.0
      %1954 = vmatprep.subr.mxu0 0.0
      %1955 = vmatpush1.msra.mxu0 0.0
      %1956 = vmatprep.subr.mxu0 0.0
      %1957 = vmatpush1.msra.mxu0 0.0
      %1958 = vmatprep.subr.mxu0 0.0
      %1959 = vmatpush1.msra.mxu0 0.0
      %1960 = vmatprep.subr.mxu0 0.0
      %1961 = vmatpush1.msra.mxu0 0.0
      %1962 = vmatprep.subr.mxu0 0.0
      %1963 = vmatpush1.msra.mxu0 0.0
      %1964 = vmatprep.subr.mxu0 0.0
      %1965 = vmatpush1.msra.mxu0 0.0
      %1966 = vmatprep.subr.mxu0 0.0
      %1967 = vmatpush1.msra.mxu0 0.0
      %1968 = vmatprep.subr.mxu0 0.0
      %1969 = vmatpush1.msra.mxu0 0.0
      %1970 = vmatprep.subr.mxu0 0.0
      %1971 = vmatpush1.msra.mxu0 0.0
      %1972 = vmatprep.subr.mxu0 0.0
      %1973 = vmatpush1.msra.mxu0 0.0
      %1974 = vmatprep.mubr.f32.mxu0 0.0
      %1975 = vmatmul.mubr.f32.gmra.mrb[0].mxu0 %v1905
      %v1976 = vpop.f32.mrb[0].mxu0
      %v1977 = vadd.f32 0.0, %v1976
      %v1978 = vpop.f32.mrb[0].mxu0
      %v1979 = vadd.f32 0.0, %v1978
      %1980 = vmatprep.mubr.f32.mxu0 0.0
      %1981 = vmatmul.mubr.f32.gmra.mrb[0].mxu0 %v1908
      %v1982 = vpop.f32.mrb[0].mxu0
      %v1983 = vadd.f32 0.0, %v1982
      %v1984 = vpop.f32.mrb[0].mxu0
      %v1985 = vadd.f32 0.0, %v1984
      %1986 = vdwg.mxu0
      %v1987 = vadd.f32 %v1889, %v1977
      %v1988 = vadd.f32 %v1890, %v1979
      %v1989 = vadd.f32 %v1891, %v1983
      %v1990 = vadd.f32 %v1892, %v1985
      %v1991 = vld [vmem:[%s4] sm:$0xff]
      %v1992 = vld [vmem:[%s4 + $0x8] sm:$0xff]
      %1994 = vset.pattern.permute.xlu0 0
      %1995 = vperm.xlu0 %1994, %v1991
      %v1996 = vpop.permute.xlu0 %1995
      %1999 = vset.pattern.permute.xlu0 0
      %2000 = vperm.xlu0 %1999, %v1992
      %v2001 = vpop.permute.xlu0 %2000
      %v2003 = vadd.f32 %v1987, %v1996
      %v2004 = vadd.f32 %v1988, %v1996
      %v2005 = vadd.f32 %v1989, %v2001
      %v2006 = vadd.f32 %v1990, %v2001
      %2007 = vst [vmem:[%s264] sm:$0xff] %v2003
      %2008 = vst [vmem:[%s264 + $0x8] sm:$0xff] %v2004
      %2009 = vst [vmem:[%s264 + $0x10] sm:$0xff] %v2005
      %2010 = vst [vmem:[%s264 + $0x18] sm:$0xff] %v2006
      %p2011 = scmp.lt.s32.totalorder %s18, 1
      %s2012 = scalar_select %p2011, %s18, 1
      %s2013 = smul.addr %s2012, 2
      %s2014 = smul.addr %s2013, 8
      %s2015 = scalar_lea.vmem %s5, %s2014
      %p2016 = scmp.lt.s32.totalorder %s18, 1
      %s2017 = scalar_select %p2016, %s18, 1
      %s2018 = smul.addr %s2017, 4
      %s2019 = smul.addr %s2018, 8
      %s2020 = scalar_lea.vmem %s6, %s2019
      // Predicated region
      $region41: #{_forward_impl.1} parent=39 // pred_check
        %p2021 = pneg %p146
      $region42: #{_forward_impl.1} parent=39 // pred_check_branch
        %2023 = sbr.rel (%p2021) target = $region44
      $region43: #{_forward_impl.1} parent=39 // pred_region
        _
      $region44: #{_forward_impl.1} parent=39 // pred_fallthru
        _
      // Predicated region
      $region45: #{_forward_impl.1} parent=39 // pred_check
        %p2024 = pneg %p172
      $region46: #{_forward_impl.1} parent=39 // pred_check_branch
        %2026 = sbr.rel (%p2024) target = $region48
      $region47: #{_forward_impl.1} parent=39 // pred_region
        _
      $region48: #{_forward_impl.1} parent=39 // pred_fallthru
        _
    $region40: #{_forward_impl.1} parent=5 // pred_fallthru
      _
    %p2027 = scmp.le.s32.totalorder 2, %s13
    // Predicated region
    $region49: #{_forward_impl.1} parent=5 // pred_check
      %p2028 = pneg %p2027
    $region50: #{_forward_impl.1} parent=5 // pred_check_branch
      %2030 = sbr.rel (%p2028) target = $region52
    $region51: #{_forward_impl.1} parent=5 // pred_region
      %s2031 = ssub.s32 %s13, 2
      // Predicated region
      $region53: #{_forward_impl.1} parent=51 // pred_check
        %p2032 = pneg %p152
      $region54: #{_forward_impl.1} parent=51 // pred_check_branch
        %2034 = sbr.rel (%p2032) target = $region56
      $region55: #{_forward_impl.1} parent=51 // pred_region
        %p2035 = scmp.lt.s32.totalorder %s19, 1
        %s2036 = scalar_select %p2035, %s19, 1
        %s2037 = smul.addr %s2036, 2
        %s2038 = smul.addr %s2037, 8
        %s2039 = scalar_lea.vmem %s5, %s2038
      $region56: #{_forward_impl.1} parent=51 // pred_fallthru
        _
      // Predicated region
      $region57: #{_forward_impl.1} parent=51 // pred_check
        %p2040 = pneg %p178
      $region58: #{_forward_impl.1} parent=51 // pred_check_branch
        %2042 = sbr.rel (%p2040) target = $region60
      $region59: #{_forward_impl.1} parent=51 // pred_region
        %p2043 = scmp.lt.s32.totalorder %s19, 1
        %s2044 = scalar_select %p2043, %s19, 1
        %s2045 = smul.addr %s2044, 4
        %s2046 = smul.addr %s2045, 8
        %s2047 = scalar_lea.vmem %s6, %s2046
      $region60: #{_forward_impl.1} parent=51 // pred_fallthru
        _
    $region52: #{_forward_impl.1} parent=5 // pred_fallthru
      _
  $region6: #{_forward_impl.1} parent=0 // loop_footer
    %s17 = sadd.s32 1, %s13
  $region7: #{_forward_impl.1} parent=0 // loop_footer_branch
    %12 = sbr.rel target = $region3
  $region8: #{_forward_impl.1} parent=0 // loop_exit
    _

</llo_original>
